<compile_context>
chip_gen: v5e
topology: v5e:2x2
jax: 0.10.0
libtpu: 0.0.40
codegen_flags: <defaults>
</compile_context>

<pallas_src>
import functools

import numpy as np
import jax
import jax.numpy as jnp
from jax.experimental import pallas as pl
from jax.experimental.pallas import tpu as pltpu

EPS = 1e-5  # nn.LayerNorm default
VMEM_LIMIT = 32 * 1024 * 1024  # explicit scoped-VMEM budget (safe on v5e/v6e/v7x)


def _round_up(x, m):
    return (x + m - 1) // m * m


def _pick_tile(dim, preferred, align):
    """Largest tile <= preferred that is a multiple of `align` and divides the
    align-rounded dim (avoids pad waste and pad/slice HBM round trips).
    Returns (tile, padded_dim)."""
    d = _round_up(max(dim, 1), align)
    if d <= preferred:
        return d, d
    t = (preferred // align) * align
    while t > align and d % t:
        t -= align
    return t, d


def _pad2(a, rows, cols):
    r, c = a.shape
    if r == rows and c == cols:
        return a
    return jnp.pad(a, ((0, rows - r), (0, cols - c)))


# ----------------------------------------------------------------------------
# Tiled matmul kernels (bias / residual / activation in the k==last finalize)
# ----------------------------------------------------------------------------
def _mm_kernel(x_ref, w_ref, b_ref, o_ref, acc_ref, *, activation):
    k = pl.program_id(2)

    @pl.when(k == 0)
    def _():
        acc_ref[...] = jnp.zeros_like(acc_ref)

    acc_ref[...] += jnp.dot(
        x_ref[...], w_ref[...], preferred_element_type=jnp.float32
    )

    @pl.when(k == pl.num_programs(2) - 1)
    def _():
        y = acc_ref[...] + b_ref[...].astype(jnp.float32)
        if activation == "gelu":
            y = jax.nn.gelu(y, approximate=True)
        o_ref[...] = y.astype(o_ref.dtype)


def _mm_res_kernel(x_ref, w_ref, b_ref, r_ref, o_ref, acc_ref, *, activation):
    k = pl.program_id(2)

    @pl.when(k == 0)
    def _():
        acc_ref[...] = jnp.zeros_like(acc_ref)

    acc_ref[...] += jnp.dot(
        x_ref[...], w_ref[...], preferred_element_type=jnp.float32
    )

    @pl.when(k == pl.num_programs(2) - 1)
    def _():
        y = acc_ref[...] + b_ref[...].astype(jnp.float32)
        if activation == "gelu":
            y = jax.nn.gelu(y, approximate=True)
        y = y + r_ref[...].astype(jnp.float32)
        o_ref[...] = y.astype(o_ref.dtype)


def matmul(x, w, b, residual=None, activation=None,
           out_dtype=jnp.bfloat16, tm=512, tn=1024, tk=512):
    """out = act(x @ w + b) [+ residual], tiled & pipelined, bf16 MXU inputs.

    Tiles are divisor-aligned so real GPT-2 dims (768/2304/3072) need no pad."""
    M, K = x.shape
    _, N = w.shape
    tm, Mp = _pick_tile(M, tm, 8)
    tn, Np = _pick_tile(N, tn, 128)
    tk, Kp = _pick_tile(K, tk, 128)

    xp = _pad2(x.astype(jnp.bfloat16), Mp, Kp)
    wp = _pad2(w.astype(jnp.bfloat16), Kp, Np)
    bp = _pad2(b.reshape(1, N).astype(jnp.float32), 1, Np)

    in_specs = [
        pl.BlockSpec((tm, tk), lambda i, j, k: (i, k)),
        pl.BlockSpec((tk, tn), lambda i, j, k: (k, j)),
        pl.BlockSpec((1, tn), lambda i, j, k: (0, j)),
    ]
    args = [xp, wp, bp]
    if residual is not None:
        rp = _pad2(residual.astype(jnp.bfloat16), Mp, Np)
        in_specs.append(pl.BlockSpec((tm, tn), lambda i, j, k: (i, j)))
        args.append(rp)
        kern = functools.partial(_mm_res_kernel, activation=activation)
    else:
        kern = functools.partial(_mm_kernel, activation=activation)

    out = pl.pallas_call(
        kern,
        out_shape=jax.ShapeDtypeStruct((Mp, Np), out_dtype),
        grid=(Mp // tm, Np // tn, Kp // tk),
        in_specs=in_specs,
        out_specs=pl.BlockSpec((tm, tn), lambda i, j, k: (i, j)),
        scratch_shapes=[pltpu.VMEM((tm, tn), jnp.float32)],
        compiler_params=pltpu.CompilerParams(
            dimension_semantics=("parallel", "parallel", "arbitrary"),
            vmem_limit_bytes=VMEM_LIMIT),
    )(*args)
    if Mp == M and Np == N:
        return out
    return out[:M, :N]


# ----------------------------------------------------------------------------
# Fused LayerNorm + matmul (LN in fp32, matmul in bf16 on the MXU)
# ----------------------------------------------------------------------------
def _ln_mm_kernel(x_ref, g_ref, b_ref, w_ref, wb_ref, o_ref, *, activation):
    x = x_ref[...].astype(jnp.float32)
    mu = jnp.mean(x, axis=-1, keepdims=True)
    xc = x - mu
    var = jnp.mean(xc * xc, axis=-1, keepdims=True)
    h = xc * jax.lax.rsqrt(var + EPS)
    h = h * g_ref[...].astype(jnp.float32) + b_ref[...].astype(jnp.float32)
    y = jnp.dot(h.astype(jnp.bfloat16), w_ref[...],
                preferred_element_type=jnp.float32)
    y = y + wb_ref[...].astype(jnp.float32)
    if activation == "gelu":
        y = jax.nn.gelu(y, approximate=True)
    o_ref[...] = y.astype(o_ref.dtype)


def ln_matmul(x, g, beta, w, b, activation=None,
              out_dtype=jnp.bfloat16, tm=512, tn=1024):
    """out = act(LayerNorm(x) @ w + b); K (=C) kept whole so LN sees full row;
    N (e.g. vocab) is tiled so large weights are streamed, never resident."""
    M, K = x.shape
    _, N = w.shape
    tm, Mp = _pick_tile(M, tm, 8)
    tn, Np = _pick_tile(N, tn, 128)

    xp = _pad2(x.astype(jnp.bfloat16), Mp, K)
    wp = _pad2(w.astype(jnp.bfloat16), K, Np)
    bp = _pad2(b.reshape(1, N).astype(jnp.float32), 1, Np)
    gp = g.reshape(1, K).astype(jnp.float32)
    betap = beta.reshape(1, K).astype(jnp.float32)

    out = pl.pallas_call(
        functools.partial(_ln_mm_kernel, activation=activation),
        out_shape=jax.ShapeDtypeStruct((Mp, Np), out_dtype),
        grid=(Mp // tm, Np // tn),
        in_specs=[
            pl.BlockSpec((tm, K), lambda i, j: (i, 0)),
            pl.BlockSpec((1, K), lambda i, j: (0, 0)),
            pl.BlockSpec((1, K), lambda i, j: (0, 0)),
            pl.BlockSpec((K, tn), lambda i, j: (0, j)),
            pl.BlockSpec((1, tn), lambda i, j: (0, j)),
        ],
        out_specs=pl.BlockSpec((tm, tn), lambda i, j: (i, j)),
        compiler_params=pltpu.CompilerParams(
            dimension_semantics=("parallel", "parallel"),
            vmem_limit_bytes=VMEM_LIMIT),
    )(xp, gp, betap, wp, bp)
    if Mp == M and Np == N:
        return out
    return out[:M, :N]


# ----------------------------------------------------------------------------
# Flash attention: flattened (qi, ki) pair grid (causal tiles never DMA'd),
# online softmax, fp32 scores, boundary-only masking.
# ----------------------------------------------------------------------------
def _attn_pairs(nq, nk, tk, t_true, causal):
    """Static lookup tables over live (qi, ki) tile pairs."""
    kcap = (min(t_true, nk * tk) - 1) // tk       # last k-tile with live columns
    qs, ks, last = [], [], []
    for qi in range(nq):
        kmax = min(qi, kcap) if causal else kcap  # tq == tk => diag tile is ki == qi
        for ki in range(kmax + 1):
            qs.append(qi)
            ks.append(ki)
            last.append(1 if ki == kmax else 0)
    return (np.asarray(qs, np.int32), np.asarray(ks, np.int32),
            np.asarray(last, np.int32))


def _flash_kernel(qt_ref, kt_ref, lt_ref, q_ref, k_ref, v_ref, o_ref,
                  m_ref, l_ref, acc_ref, *, scale, causal, t_true, tq, tk):
    p = pl.program_id(1)
    qi = qt_ref[p]
    ki = kt_ref[p]

    @pl.when(ki == 0)
    def _():
        m_ref[...] = jnp.full(m_ref.shape, -jnp.inf, dtype=jnp.float32)
        l_ref[...] = jnp.zeros_like(l_ref)
        acc_ref[...] = jnp.zeros_like(acc_ref)

    q = q_ref[0]          # (tq, hd) bf16
    kk = k_ref[0]         # (tk, hd) bf16
    vv = v_ref[0]         # (tk, hd) bf16
    # q @ k^T without materializing a transpose.
    s = jax.lax.dot_general(
        q, kk, (((1,), (1,)), ((), ())),
        preferred_element_type=jnp.float32) * scale           # (tq, tk) fp32

    k_start = ki * tk
    q_start = qi * tq
    # Mask only on boundary tiles: sequence-tail tile and (causal) diagonal.
    needs_mask = k_start + tk > t_true
    if causal:
        needs_mask = jnp.logical_or(needs_mask, ki == qi)

    def update(scores):
        m_prev = m_ref[...]
        m_new = jnp.maximum(m_prev, jnp.max(scores, axis=-1, keepdims=True))
        alpha = jnp.exp(m_prev - m_new)
        pmat = jnp.exp(scores - m_new)     # masked entries underflow to 0
        l_ref[...] = alpha * l_ref[...] + jnp.sum(pmat, axis=-1, keepdims=True)
        acc_ref[...] = alpha * acc_ref[...] + jnp.dot(
            pmat.astype(vv.dtype), vv, preferred_element_type=jnp.float32)
        m_ref[...] = m_new

    @pl.when(needs_mask)
    def _():
        cols = k_start + jax.lax.broadcasted_iota(jnp.int32, (tq, tk), 1)
        mask = cols < t_true
        if causal:
            rows = q_start + jax.lax.broadcasted_iota(jnp.int32, (tq, tk), 0)
            mask = jnp.logical_and(mask, cols <= rows)
        update(jnp.where(mask, s, -1e30))

    @pl.when(jnp.logical_not(needs_mask))
    def _():
        update(s)

    @pl.when(lt_ref[p] == 1)
    def _():
        # TODO(synk): approx=False if bit-level parity with a reference is needed.
        inv = pl.reciprocal(l_ref[...], approx=True)
        o_ref[0] = (acc_ref[...] * inv).astype(o_ref.dtype)


def flash_attention(q, k, v, *, scale, causal, t_true,
                    out_dtype=jnp.bfloat16, tile=256):
    """q, k, v: (B*H, T, hd).  Online-softmax attention over live tiles only."""
    BH, T, hd = q.shape
    tq = min(tile, _round_up(T, 8))
    tk = tq
    Tp = _round_up(T, tq)
    nq, nk = Tp // tq, Tp // tk

    def pad_t(a):
        a = a.astype(jnp.bfloat16)
        if a.shape[1] == Tp:
            return a
        return jnp.pad(a, ((0, 0), (0, Tp - a.shape[1]), (0, 0)))

    qp, kp, vp = pad_t(q), pad_t(k), pad_t(v)
    qi_tab, ki_tab, last_tab = _attn_pairs(nq, nk, tk, t_true, causal)
    n_pairs = int(qi_tab.shape[0])

    kern = functools.partial(_flash_kernel, scale=scale, causal=causal,
                             t_true=t_true, tq=tq, tk=tk)
    q_spec = pl.BlockSpec((1, tq, hd), lambda h, p, qt, kt, lt: (h, qt[p], 0))
    kv_spec = pl.BlockSpec((1, tk, hd), lambda h, p, qt, kt, lt: (h, kt[p], 0))
    o_spec = pl.BlockSpec((1, tq, hd), lambda h, p, qt, kt, lt: (h, qt[p], 0))

    out = pl.pallas_call(
        kern,
        out_shape=jax.ShapeDtypeStruct((BH, Tp, hd), out_dtype),
        grid_spec=pltpu.PrefetchScalarGridSpec(
            num_scalar_prefetch=3,
            grid=(BH, n_pairs),
            in_specs=[q_spec, kv_spec, kv_spec],
            out_specs=o_spec,
            scratch_shapes=[
                pltpu.VMEM((tq, 1), jnp.float32),
                pltpu.VMEM((tq, 1), jnp.float32),
                pltpu.VMEM((tq, hd), jnp.float32),
            ]),
        compiler_params=pltpu.CompilerParams(
            dimension_semantics=("parallel", "arbitrary"),
            vmem_limit_bytes=VMEM_LIMIT),
    )(jnp.asarray(qi_tab), jnp.asarray(ki_tab), jnp.asarray(last_tab),
      qp, kp, vp)
    if Tp == T:
        return out
    return out[:, :T, :]


# ----------------------------------------------------------------------------
# GPT-2 model (glue in plain JAX, hot paths in Pallas)
# ----------------------------------------------------------------------------
def init_params(key, cfg):
    V, C = cfg["vocab_size"], cfg["n_embed"]
    L, BS = cfg["num_layers"], cfg["block_size"]
    Vp = _round_up(V, 128)   # pad vocab once at init (no per-forward lm_w pad)

    def w(k, shape):
        return (0.02 * jax.random.normal(k, shape)).astype(jnp.bfloat16)

    keys = jax.random.split(key, 4 + L)
    lm_w = w(keys[2], (C, V))
    params = {
        "tok_emb": w(keys[0], (V, C)),
        "pos_emb": w(keys[1], (BS, C)),
        "ln_f_g": jnp.ones((C,), jnp.float32),
        "ln_f_b": jnp.zeros((C,), jnp.float32),
        "lm_w": _pad2(lm_w, C, Vp),
        "lm_b": jnp.zeros((Vp,), jnp.float32),
        "blocks": [],
    }
    for i in range(L):
        bk = jax.random.split(keys[4 + i], 4)
        params["blocks"].append(
            {
                "ln1_g": jnp.ones((C,), jnp.float32),
                "ln1_b": jnp.zeros((C,), jnp.float32),
                "wqkv": w(bk[0], (C, 3 * C)),
                "bqkv": jnp.zeros((3 * C,), jnp.float32),
                "wo": w(bk[1], (C, C)), "bo": jnp.zeros((C,), jnp.float32),
                "ln2_g": jnp.ones((C,), jnp.float32),
                "ln2_b": jnp.zeros((C,), jnp.float32),
                "w1": w(bk[2], (C, 4 * C)), "b1": jnp.zeros((4 * C,), jnp.float32),
                "w2": w(bk[3], (4 * C, C)), "b2": jnp.zeros((C,), jnp.float32),
            }
        )
    return params


def block_forward(p, x, num_heads, is_causal):
    B, T, C = x.shape
    hd = C // num_heads
    xf = x.reshape(B * T, C)

    # --- attention sub-block: fused LN + QKV projection (one matmul) ---
    qkv = ln_matmul(xf, p["ln1_g"], p["ln1_b"], p["wqkv"], p["bqkv"])
    q, k, v = qkv[:, :C], qkv[:, C:2 * C], qkv[:, 2 * C:]

    def to_heads(t):
        return (t.reshape(B, T, num_heads, hd)
                 .transpose(0, 2, 1, 3)
                 .reshape(B * num_heads, T, hd))

    oh = flash_attention(to_heads(q), to_heads(k), to_heads(v),
                         scale=hd ** -0.5, causal=is_causal, t_true=T)
    o = (oh.reshape(B, num_heads, T, hd)
           .transpose(0, 2, 1, 3)
           .reshape(B * T, C))
    x1 = matmul(o, p["wo"], p["bo"], residual=xf)       # attn proj + residual

    # --- MLP sub-block: fused LN + fc1 + GELU, then fc2 + residual ---
    h = ln_matmul(x1, p["ln2_g"], p["ln2_b"], p["w1"], p["b1"], activation="gelu")
    x2 = matmul(h, p["w2"], p["b2"], residual=x1)
    return x2.reshape(B, T, C)


def gpt2_forward(params, cfg, idx, targets=None):
    B, T = idx.shape
    C, V = cfg["n_embed"], cfg["vocab_size"]
    Vp = params["lm_w"].shape[1]

    x = params["tok_emb"][idx]                          # (B, T, C) gather (glue)
    if not cfg["use_rope"]:
        x = x + params["pos_emb"][:T][None, :, :]

    for p in params["blocks"]:
        x = block_forward(p, x, cfg["num_heads"], cfg["languagemodel"]["is_causal"])

    # Final LayerNorm fused into the vocab-tiled lm_head projection.
    # lm_w is padded to Vp (multiple of 128) at init; tm=1024 reduces how many
    # times the large weight is re-streamed.
    xf = x.reshape(B * T, C)
    logits_p = ln_matmul(xf, params["ln_f_g"], params["ln_f_b"],
                         params["lm_w"], params["lm_b"],
                         out_dtype=jnp.float32, tm=1024, tn=512)
    logits = logits_p.reshape(B, T, Vp)
    if Vp != V:
        logits = logits[:, :, :V]

    if targets is None:
        loss = None
    else:
        # cross_entropy with ignore_index=-100, mean reduction (plain-JAX glue)
        lg = logits.reshape(B * T, V)
        tg = targets.reshape(B * T)
        lse = jax.nn.logsumexp(lg, axis=-1)
        safe_tg = jnp.where(tg == -100, 0, tg)
        nll = lse - jnp.take_along_axis(lg, safe_tg[:, None], axis=-1)[:, 0]
        mask = (tg != -100).astype(jnp.float32)
        loss = jnp.sum(nll * mask) / jnp.maximum(jnp.sum(mask), 1.0)
    return logits, loss


# ----------------------------------------------------------------------------
if __name__ == "__main__":
    cfg = dict(
        vocab_size=64,
        num_layers=2,
        num_heads=4,
        n_embed=32,
        block_size=8,
        languagemodel={"is_causal": True},
        use_rope=False,
    )
    key = jax.random.PRNGKey(0)
    params = init_params(key, cfg)
    idx = jax.random.randint(
        jax.random.PRNGKey(1), (2, cfg["block_size"]), 0, cfg["vocab_size"]
    )

    fwd = jax.jit(lambda prm, ix: gpt2_forward(prm, cfg, ix, targets=None))
    logits, loss = fwd(params, idx)
    jax.block_until_ready(logits)
    assert logits.shape == (2, cfg["block_size"], cfg["vocab_size"])
    assert logits.dtype == jnp.float32
    assert bool(jnp.all(jnp.isfinite(logits)))
    assert loss is None
    print("KERNEL_OK")
</pallas_src>

<mosaic_0001>
module attributes {stable_mosaic.version = 11 : i64} {
  func.func @_ln_mm_kernel(%arg0: i32, %arg1: i32, %arg2: memref<16x32xbf16, #tpu.memory_space<vmem>>, %arg3: memref<1x32xf32, #tpu.memory_space<vmem>>, %arg4: memref<1x32xf32, #tpu.memory_space<vmem>>, %arg5: memref<32x128xbf16, #tpu.memory_space<vmem>>, %arg6: memref<1x128xf32, #tpu.memory_space<vmem>>, %arg7: memref<16x128xbf16, #tpu.memory_space<vmem>>) attributes {dimension_semantics = [#tpu.dimension_semantics<parallel>, #tpu.dimension_semantics<parallel>], iteration_bounds = array<i64: 1, 1>, scalar_prefetch = 0 : i64, scratch_operands = 0 : i64, tpu.core_type = #tpu.core_type<tc>, window_params = [{transform_indices = @transform_0, window_bounds = array<i64: 16, 32>}, {pipeline_mode = #tpu.pipeline_mode<synchronous>, transform_indices = @transform_1, window_bounds = array<i64: 1, 32>}, {pipeline_mode = #tpu.pipeline_mode<synchronous>, transform_indices = @transform_2, window_bounds = array<i64: 1, 32>}, {transform_indices = @transform_3, window_bounds = array<i64: 32, 128>}, {transform_indices = @transform_4, window_bounds = array<i64: 1, 128>}, {transform_indices = @transform_5, window_bounds = array<i64: 16, 128>}]} {
    %c0 = arith.constant 0 : index
    %c0_0 = arith.constant 0 : index
    %0 = vector.load %arg2[%c0, %c0_0] : memref<16x32xbf16, #tpu.memory_space<vmem>>, vector<16x32xbf16>
    %1 = arith.extf %0 : vector<16x32xbf16> to vector<16x32xf32>
    %cst = arith.constant dense<0.000000e+00> : vector<16xf32>
    %2 = vector.multi_reduction <add>, %1, %cst [1] : vector<16x32xf32> to vector<16xf32>
    %3 = vector.shape_cast %2 : vector<16xf32> to vector<16x1xf32>
    %cst_1 = arith.constant 3.200000e+01 : f32
    %4 = vector.broadcast %cst_1 : f32 to vector<16x1xf32>
    %5 = arith.divf %3, %4 : vector<16x1xf32>
    %6 = vector.broadcast %5 : vector<16x1xf32> to vector<16x32xf32>
    %7 = arith.subf %1, %6 : vector<16x32xf32>
    %8 = arith.mulf %7, %7 : vector<16x32xf32>
    %cst_2 = arith.constant dense<0.000000e+00> : vector<16xf32>
    %9 = vector.multi_reduction <add>, %8, %cst_2 [1] : vector<16x32xf32> to vector<16xf32>
    %10 = vector.shape_cast %9 : vector<16xf32> to vector<16x1xf32>
    %cst_3 = arith.constant 3.200000e+01 : f32
    %11 = vector.broadcast %cst_3 : f32 to vector<16x1xf32>
    %12 = arith.divf %10, %11 : vector<16x1xf32>
    %cst_4 = arith.constant 9.99999974E-6 : f32
    %13 = vector.broadcast %cst_4 : f32 to vector<16x1xf32>
    %14 = arith.addf %12, %13 : vector<16x1xf32>
    %15 = math.rsqrt %14 : vector<16x1xf32>
    %16 = vector.broadcast %15 : vector<16x1xf32> to vector<16x32xf32>
    %17 = arith.mulf %7, %16 : vector<16x32xf32>
    %c0_5 = arith.constant 0 : index
    %c0_6 = arith.constant 0 : index
    %18 = vector.load %arg3[%c0_5, %c0_6] : memref<1x32xf32, #tpu.memory_space<vmem>>, vector<1x32xf32>
    %19 = vector.broadcast %18 : vector<1x32xf32> to vector<16x32xf32>
    %20 = arith.mulf %17, %19 : vector<16x32xf32>
    %c0_7 = arith.constant 0 : index
    %c0_8 = arith.constant 0 : index
    %21 = vector.load %arg4[%c0_7, %c0_8] : memref<1x32xf32, #tpu.memory_space<vmem>>, vector<1x32xf32>
    %22 = vector.broadcast %21 : vector<1x32xf32> to vector<16x32xf32>
    %23 = arith.addf %20, %22 : vector<16x32xf32>
    %24 = arith.truncf %23 : vector<16x32xf32> to vector<16x32xbf16>
    %c0_9 = arith.constant 0 : index
    %c0_10 = arith.constant 0 : index
    %25 = vector.load %arg5[%c0_9, %c0_10] : memref<32x128xbf16, #tpu.memory_space<vmem>>, vector<32x128xbf16>
    %cst_11 = arith.constant dense<0.000000e+00> : vector<16x128xf32>
    %26 = tpu.matmul %24, %25, %cst_11 {dimension_numbers = #tpu.dot_dimension_numbers<[1], [0], [0], [1], [0, 0, 1, 1], [], []>} : vector<16x32xbf16>, vector<32x128xbf16>, vector<16x128xf32> -> vector<16x128xf32>
    %c0_12 = arith.constant 0 : index
    %c0_13 = arith.constant 0 : index
    %27 = vector.load %arg6[%c0_12, %c0_13] : memref<1x128xf32, #tpu.memory_space<vmem>>, vector<1x128xf32>
    %28 = vector.broadcast %27 : vector<1x128xf32> to vector<16x128xf32>
    %29 = arith.addf %26, %28 : vector<16x128xf32>
    %30 = arith.truncf %29 : vector<16x128xf32> to vector<16x128xbf16>
    %c0_14 = arith.constant 0 : index
    %c0_15 = arith.constant 0 : index
    %31 = vector.load %arg7[%c0_14, %c0_15] : memref<16x128xbf16, #tpu.memory_space<vmem>>, vector<16x128xbf16>
    tpu.vector_store %arg7[%c0_14, %c0_15], %30 {strides = array<i32>} : memref<16x128xbf16, #tpu.memory_space<vmem>>, vector<16x128xbf16>,
    return
  }
  func.func @transform_0(%arg0: i32, %arg1: i32) -> (i32, i32) {
    %c0_i32 = arith.constant 0 : i32
    %c0_i32_0 = arith.constant 0 : i32
    return %arg0, %c0_i32 : i32, i32
  }
  func.func @transform_1(%arg0: i32, %arg1: i32) -> (i32, i32) {
    %c0_i32 = arith.constant 0 : i32
    %c0_i32_0 = arith.constant 0 : i32
    %c0_i32_1 = arith.constant 0 : i32
    return %c0_i32, %c0_i32_0 : i32, i32
  }
  func.func @transform_2(%arg0: i32, %arg1: i32) -> (i32, i32) {
    %c0_i32 = arith.constant 0 : i32
    %c0_i32_0 = arith.constant 0 : i32
    %c0_i32_1 = arith.constant 0 : i32
    return %c0_i32, %c0_i32_0 : i32, i32
  }
  func.func @transform_3(%arg0: i32, %arg1: i32) -> (i32, i32) {
    %c0_i32 = arith.constant 0 : i32
    %c0_i32_0 = arith.constant 0 : i32
    return %c0_i32, %arg1 : i32, i32
  }
  func.func @transform_4(%arg0: i32, %arg1: i32) -> (i32, i32) {
    %c0_i32 = arith.constant 0 : i32
    %c0_i32_0 = arith.constant 0 : i32
    return %c0_i32, %arg1 : i32, i32
  }
  func.func @transform_5(%arg0: i32, %arg1: i32) -> (i32, i32) {
    %c0_i32 = arith.constant 0 : i32
    return %arg0, %arg1 : i32, i32
  }
}

module attributes {stable_mosaic.version = 11 : i64} {
  func.func @_flash_kernel(%arg0: i32, %arg1: i32, %arg2: memref<1xi32, #tpu.memory_space<smem>>, %arg3: memref<1xi32, #tpu.memory_space<smem>>, %arg4: memref<1xi32, #tpu.memory_space<smem>>, %arg5: memref<1x8x8xbf16, #tpu.memory_space<vmem>>, %arg6: memref<1x8x8xbf16, #tpu.memory_space<vmem>>, %arg7: memref<1x8x8xbf16, #tpu.memory_space<vmem>>, %arg8: memref<1x8x8xbf16, #tpu.memory_space<vmem>>, %arg9: memref<8x1xf32, #tpu.memory_space<vmem>>, %arg10: memref<8x1xf32, #tpu.memory_space<vmem>>, %arg11: memref<8x8xf32, #tpu.memory_space<vmem>>) attributes {dimension_semantics = [#tpu.dimension_semantics<parallel>, #tpu.dimension_semantics<arbitrary>], iteration_bounds = array<i64: 8, 1>, scalar_prefetch = 3 : i64, scratch_operands = 3 : i64, tpu.core_type = #tpu.core_type<tc>, window_params = [{transform_indices = @transform_0, window_bounds = array<i64: 1, 8, 8>}, {transform_indices = @transform_1, window_bounds = array<i64: 1, 8, 8>}, {transform_indices = @transform_2, window_bounds = array<i64: 1, 8, 8>}, {transform_indices = @transform_3, window_bounds = array<i64: 1, 8, 8>}]} {
    %0 = arith.index_cast %arg1 : i32 to index
    %1 = memref.load %arg2[%0] : memref<1xi32, #tpu.memory_space<smem>>
    %2 = arith.index_cast %arg1 : i32 to index
    %3 = memref.load %arg3[%2] : memref<1xi32, #tpu.memory_space<smem>>
    %c0_i32 = arith.constant 0 : i32
    %4 = arith.cmpi eq, %3, %c0_i32 : i32
    %5 = arith.extui %4 : i1 to i32
    %c0_i32_0 = arith.constant 0 : i32
    %6 = arith.cmpi ne, %5, %c0_i32_0 : i32
    scf.if %6 {
      %cst_16 = arith.constant 0xFF800000 : f32
      %32 = vector.broadcast %cst_16 : f32 to vector<8x1xf32>
      %c0_17 = arith.constant 0 : index
      %c0_18 = arith.constant 0 : index
      %33 = vector.load %arg9[%c0_17, %c0_18] : memref<8x1xf32, #tpu.memory_space<vmem>>, vector<8x1xf32>
      tpu.vector_store %arg9[%c0_17, %c0_18], %32 {strides = array<i32>} : memref<8x1xf32, #tpu.memory_space<vmem>>, vector<8x1xf32>,
      %cst_19 = arith.constant 0.000000e+00 : f32
      %34 = vector.broadcast %cst_19 : f32 to vector<8x1xf32>
      %c0_20 = arith.constant 0 : index
      %c0_21 = arith.constant 0 : index
      %35 = vector.load %arg10[%c0_20, %c0_21] : memref<8x1xf32, #tpu.memory_space<vmem>>, vector<8x1xf32>
      tpu.vector_store %arg10[%c0_20, %c0_21], %34 {strides = array<i32>} : memref<8x1xf32, #tpu.memory_space<vmem>>, vector<8x1xf32>,
      %cst_22 = arith.constant 0.000000e+00 : f32
      %36 = vector.broadcast %cst_22 : f32 to vector<8x8xf32>
      %c0_23 = arith.constant 0 : index
      %c0_24 = arith.constant 0 : index
      %37 = vector.load %arg11[%c0_23, %c0_24] : memref<8x8xf32, #tpu.memory_space<vmem>>, vector<8x8xf32>
      tpu.vector_store %arg11[%c0_23, %c0_24], %36 {strides = array<i32>} : memref<8x8xf32, #tpu.memory_space<vmem>>, vector<8x8xf32>,
    } else {
    }
    %c0 = arith.constant 0 : index
    %c0_1 = arith.constant 0 : index
    %c0_2 = arith.constant 0 : index
    %7 = vector.load %arg5[%c0, %c0_1, %c0_2] : memref<1x8x8xbf16, #tpu.memory_space<vmem>>, vector<1x8x8xbf16>
    %8 = vector.shape_cast %7 : vector<1x8x8xbf16> to vector<8x8xbf16>
    %c0_3 = arith.constant 0 : index
    %c0_4 = arith.constant 0 : index
    %c0_5 = arith.constant 0 : index
    %9 = vector.load %arg6[%c0_3, %c0_4, %c0_5] : memref<1x8x8xbf16, #tpu.memory_space<vmem>>, vector<1x8x8xbf16>
    %10 = vector.shape_cast %9 : vector<1x8x8xbf16> to vector<8x8xbf16>
    %c0_6 = arith.constant 0 : index
    %c0_7 = arith.constant 0 : index
    %c0_8 = arith.constant 0 : index
    %11 = vector.load %arg7[%c0_6, %c0_7, %c0_8] : memref<1x8x8xbf16, #tpu.memory_space<vmem>>, vector<1x8x8xbf16>
    %12 = vector.shape_cast %11 : vector<1x8x8xbf16> to vector<8x8xbf16>
    %cst = arith.constant dense<0.000000e+00> : vector<8x8xf32>
    %13 = tpu.matmul %8, %10, %cst {dimension_numbers = #tpu.dot_dimension_numbers<[1], [1], [0], [0], [0, 0, 1, 0], [], []>} : vector<8x8xbf16>, vector<8x8xbf16>, vector<8x8xf32> -> vector<8x8xf32>
    %cst_9 = arith.constant 0.353553385 : f32
    %14 = vector.broadcast %cst_9 : f32 to vector<8x8xf32>
    %15 = arith.mulf %13, %14 : vector<8x8xf32>
    %c8_i32 = arith.constant 8 : i32
    %16 = arith.muli %3, %c8_i32 : i32
    %c8_i32_10 = arith.constant 8 : i32
    %17 = arith.muli %1, %c8_i32_10 : i32
    %c8_i32_11 = arith.constant 8 : i32
    %18 = arith.addi %16, %c8_i32_11 : i32
    %c8_i32_12 = arith.constant 8 : i32
    %19 = arith.cmpi sgt, %18, %c8_i32_12 : i32
    %20 = arith.cmpi eq, %3, %1 : i32
    %21 = arith.ori %19, %20 : i1
    %22 = arith.extui %21 : i1 to i32
    %c0_i32_13 = arith.constant 0 : i32
    %23 = arith.cmpi ne, %22, %c0_i32_13 : i32
    scf.if %23 {
      %32 = tpu.iota {dimensions = array<i32: 1>} : vector<8x8xi32>
      %33 = vector.broadcast %16 : i32 to vector<8x8xi32>
      %34 = arith.addi %33, %32 : vector<8x8xi32>
      %c8_i32_16 = arith.constant 8 : i32
      %35 = vector.broadcast %c8_i32_16 : i32 to vector<8x8xi32>
      %36 = arith.cmpi slt, %34, %35 : vector<8x8xi32>
      %37 = tpu.iota {dimensions = array<i32: 0>} : vector<8x8xi32>
      %38 = vector.broadcast %17 : i32 to vector<8x8xi32>
      %39 = arith.addi %38, %37 : vector<8x8xi32>
      %40 = arith.cmpi sle, %34, %39 : vector<8x8xi32>
      %41 = arith.andi %36, %40 : vector<8x8xi1>
      %cst_17 = arith.constant -1.000000e+30 : f32
      %42 = vector.broadcast %cst_17 : f32 to vector<8x8xf32>
      %43 = arith.select %41, %15, %42 : vector<8x8xi1>, vector<8x8xf32>
      %c0_18 = arith.constant 0 : index
      %c0_19 = arith.constant 0 : index
      %44 = vector.load %arg9[%c0_18, %c0_19] : memref<8x1xf32, #tpu.memory_space<vmem>>, vector<8x1xf32>
      %cst_20 = arith.constant dense<0xFF800000> : vector<8xf32>
      %45 = vector.multi_reduction <maximumf>, %43, %cst_20 [1] : vector<8x8xf32> to vector<8xf32>
      %46 = vector.shape_cast %45 : vector<8xf32> to vector<8x1xf32>
      %47 = arith.maximumf %44, %46 : vector<8x1xf32>
      %48 = arith.subf %44, %47 : vector<8x1xf32>
      %49 = math.exp %48 : vector<8x1xf32>
      %50 = vector.broadcast %47 : vector<8x1xf32> to vector<8x8xf32>
      %51 = arith.subf %43, %50 : vector<8x8xf32>
      %52 = math.exp %51 : vector<8x8xf32>
      %c0_21 = arith.constant 0 : index
      %c0_22 = arith.constant 0 : index
      %53 = vector.load %arg10[%c0_21, %c0_22] : memref<8x1xf32, #tpu.memory_space<vmem>>, vector<8x1xf32>
      %54 = arith.mulf %49, %53 : vector<8x1xf32>
      %cst_23 = arith.constant dense<0.000000e+00> : vector<8xf32>
      %55 = vector.multi_reduction <add>, %52, %cst_23 [1] : vector<8x8xf32> to vector<8xf32>
      %56 = vector.shape_cast %55 : vector<8xf32> to vector<8x1xf32>
      %57 = arith.addf %54, %56 : vector<8x1xf32>
      %c0_24 = arith.constant 0 : index
      %c0_25 = arith.constant 0 : index
      %58 = vector.load %arg10[%c0_24, %c0_25] : memref<8x1xf32, #tpu.memory_space<vmem>>, vector<8x1xf32>
      tpu.vector_store %arg10[%c0_24, %c0_25], %57 {strides = array<i32>} : memref<8x1xf32, #tpu.memory_space<vmem>>, vector<8x1xf32>,
      %c0_26 = arith.constant 0 : index
      %c0_27 = arith.constant 0 : index
      %59 = vector.load %arg11[%c0_26, %c0_27] : memref<8x8xf32, #tpu.memory_space<vmem>>, vector<8x8xf32>
      %60 = vector.broadcast %49 : vector<8x1xf32> to vector<8x8xf32>
      %61 = arith.mulf %60, %59 : vector<8x8xf32>
      %62 = arith.truncf %52 : vector<8x8xf32> to vector<8x8xbf16>
      %cst_28 = arith.constant dense<0.000000e+00> : vector<8x8xf32>
      %63 = tpu.matmul %62, %12, %cst_28 {dimension_numbers = #tpu.dot_dimension_numbers<[1], [0], [0], [1], [0, 0, 1, 1], [], []>} : vector<8x8xbf16>, vector<8x8xbf16>, vector<8x8xf32> -> vector<8x8xf32>
      %64 = arith.addf %61, %63 : vector<8x8xf32>
      %c0_29 = arith.constant 0 : index
      %c0_30 = arith.constant 0 : index
      %65 = vector.load %arg11[%c0_29, %c0_30] : memref<8x8xf32, #tpu.memory_space<vmem>>, vector<8x8xf32>
      tpu.vector_store %arg11[%c0_29, %c0_30], %64 {strides = array<i32>} : memref<8x8xf32, #tpu.memory_space<vmem>>, vector<8x8xf32>,
      %c0_31 = arith.constant 0 : index
      %c0_32 = arith.constant 0 : index
      %66 = vector.load %arg9[%c0_31, %c0_32] : memref<8x1xf32, #tpu.memory_space<vmem>>, vector<8x1xf32>
      tpu.vector_store %arg9[%c0_31, %c0_32], %47 {strides = array<i32>} : memref<8x1xf32, #tpu.memory_space<vmem>>, vector<8x1xf32>,
    } else {
    }
    %true = arith.constant true
    %24 = arith.xori %21, %true : i1
    %25 = arith.extui %24 : i1 to i32
    %c0_i32_14 = arith.constant 0 : i32
    %26 = arith.cmpi ne, %25, %c0_i32_14 : i32
    scf.if %26 {
      %c0_16 = arith.constant 0 : index
      %c0_17 = arith.constant 0 : index
      %32 = vector.load %arg9[%c0_16, %c0_17] : memref<8x1xf32, #tpu.memory_space<vmem>>, vector<8x1xf32>
      %cst_18 = arith.constant dense<0xFF800000> : vector<8xf32>
      %33 = vector.multi_reduction <maximumf>, %15, %cst_18 [1] : vector<8x8xf32> to vector<8xf32>
      %34 = vector.shape_cast %33 : vector<8xf32> to vector<8x1xf32>
      %35 = arith.maximumf %32, %34 : vector<8x1xf32>
      %36 = arith.subf %32, %35 : vector<8x1xf32>
      %37 = math.exp %36 : vector<8x1xf32>
      %38 = vector.broadcast %35 : vector<8x1xf32> to vector<8x8xf32>
      %39 = arith.subf %15, %38 : vector<8x8xf32>
      %40 = math.exp %39 : vector<8x8xf32>
      %c0_19 = arith.constant 0 : index
      %c0_20 = arith.constant 0 : index
      %41 = vector.load %arg10[%c0_19, %c0_20] : memref<8x1xf32, #tpu.memory_space<vmem>>, vector<8x1xf32>
      %42 = arith.mulf %37, %41 : vector<8x1xf32>
      %cst_21 = arith.constant dense<0.000000e+00> : vector<8xf32>
      %43 = vector.multi_reduction <add>, %40, %cst_21 [1] : vector<8x8xf32> to vector<8xf32>
      %44 = vector.shape_cast %43 : vector<8xf32> to vector<8x1xf32>
      %45 = arith.addf %42, %44 : vector<8x1xf32>
      %c0_22 = arith.constant 0 : index
      %c0_23 = arith.constant 0 : index
      %46 = vector.load %arg10[%c0_22, %c0_23] : memref<8x1xf32, #tpu.memory_space<vmem>>, vector<8x1xf32>
      tpu.vector_store %arg10[%c0_22, %c0_23], %45 {strides = array<i32>} : memref<8x1xf32, #tpu.memory_space<vmem>>, vector<8x1xf32>,
      %c0_24 = arith.constant 0 : index
      %c0_25 = arith.constant 0 : index
      %47 = vector.load %arg11[%c0_24, %c0_25] : memref<8x8xf32, #tpu.memory_space<vmem>>, vector<8x8xf32>
      %48 = vector.broadcast %37 : vector<8x1xf32> to vector<8x8xf32>
      %49 = arith.mulf %48, %47 : vector<8x8xf32>
      %50 = arith.truncf %40 : vector<8x8xf32> to vector<8x8xbf16>
      %cst_26 = arith.constant dense<0.000000e+00> : vector<8x8xf32>
      %51 = tpu.matmul %50, %12, %cst_26 {dimension_numbers = #tpu.dot_dimension_numbers<[1], [0], [0], [1], [0, 0, 1, 1], [], []>} : vector<8x8xbf16>, vector<8x8xbf16>, vector<8x8xf32> -> vector<8x8xf32>
      %52 = arith.addf %49, %51 : vector<8x8xf32>
      %c0_27 = arith.constant 0 : index
      %c0_28 = arith.constant 0 : index
      %53 = vector.load %arg11[%c0_27, %c0_28] : memref<8x8xf32, #tpu.memory_space<vmem>>, vector<8x8xf32>
      tpu.vector_store %arg11[%c0_27, %c0_28], %52 {strides = array<i32>} : memref<8x8xf32, #tpu.memory_space<vmem>>, vector<8x8xf32>,
      %c0_29 = arith.constant 0 : index
      %c0_30 = arith.constant 0 : index
      %54 = vector.load %arg9[%c0_29, %c0_30] : memref<8x1xf32, #tpu.memory_space<vmem>>, vector<8x1xf32>
      tpu.vector_store %arg9[%c0_29, %c0_30], %35 {strides = array<i32>} : memref<8x1xf32, #tpu.memory_space<vmem>>, vector<8x1xf32>,
    } else {
    }
    %27 = arith.index_cast %arg1 : i32 to index
    %28 = memref.load %arg4[%27] : memref<1xi32, #tpu.memory_space<smem>>
    %c1_i32 = arith.constant 1 : i32
    %29 = arith.cmpi eq, %28, %c1_i32 : i32
    %30 = arith.extui %29 : i1 to i32
    %c0_i32_15 = arith.constant 0 : i32
    %31 = arith.cmpi ne, %30, %c0_i32_15 : i32
    scf.if %31 {
      %c0_16 = arith.constant 0 : index
      %c0_17 = arith.constant 0 : index
      %32 = vector.load %arg10[%c0_16, %c0_17] : memref<8x1xf32, #tpu.memory_space<vmem>>, vector<8x1xf32>
      %33 = tpu.reciprocal %32 {approx = true} : vector<8x1xf32> -> vector<8x1xf32>
      %c0_18 = arith.constant 0 : index
      %c0_19 = arith.constant 0 : index
      %34 = vector.load %arg11[%c0_18, %c0_19] : memref<8x8xf32, #tpu.memory_space<vmem>>, vector<8x8xf32>
      %35 = vector.broadcast %33 : vector<8x1xf32> to vector<8x8xf32>
      %36 = arith.mulf %34, %35 : vector<8x8xf32>
      %37 = arith.truncf %36 : vector<8x8xf32> to vector<8x8xbf16>
      %c0_20 = arith.constant 0 : index
      %c0_21 = arith.constant 0 : index
      %c0_22 = arith.constant 0 : index
      %38 = vector.load %arg8[%c0_20, %c0_21, %c0_22] : memref<1x8x8xbf16, #tpu.memory_space<vmem>>, vector<1x8x8xbf16>
      %39 = vector.shape_cast %38 : vector<1x8x8xbf16> to vector<8x8xbf16>
      %40 = vector.shape_cast %37 : vector<8x8xbf16> to vector<1x8x8xbf16>
      tpu.vector_store %arg8[%c0_20, %c0_21, %c0_22], %40 {strides = array<i32>} : memref<1x8x8xbf16, #tpu.memory_space<vmem>>, vector<1x8x8xbf16>,
    } else {
    }
    return
  }
  func.func @transform_0(%arg0: i32, %arg1: i32, %arg2: memref<1xi32, #tpu.memory_space<smem>>, %arg3: memref<1xi32, #tpu.memory_space<smem>>, %arg4: memref<1xi32, #tpu.memory_space<smem>>) -> (i32, i32, i32) {
    %0 = arith.index_cast %arg1 : i32 to index
    %1 = memref.load %arg2[%0] : memref<1xi32, #tpu.memory_space<smem>>
    %c0_i32 = arith.constant 0 : i32
    %c0_i32_0 = arith.constant 0 : i32
    return %arg0, %1, %c0_i32 : i32, i32, i32
  }
  func.func @transform_1(%arg0: i32, %arg1: i32, %arg2: memref<1xi32, #tpu.memory_space<smem>>, %arg3: memref<1xi32, #tpu.memory_space<smem>>, %arg4: memref<1xi32, #tpu.memory_space<smem>>) -> (i32, i32, i32) {
    %0 = arith.index_cast %arg1 : i32 to index
    %1 = memref.load %arg3[%0] : memref<1xi32, #tpu.memory_space<smem>>
    %c0_i32 = arith.constant 0 : i32
    %c0_i32_0 = arith.constant 0 : i32
    return %arg0, %1, %c0_i32 : i32, i32, i32
  }
  func.func @transform_2(%arg0: i32, %arg1: i32, %arg2: memref<1xi32, #tpu.memory_space<smem>>, %arg3: memref<1xi32, #tpu.memory_space<smem>>, %arg4: memref<1xi32, #tpu.memory_space<smem>>) -> (i32, i32, i32) {
    %0 = arith.index_cast %arg1 : i32 to index
    %1 = memref.load %arg3[%0] : memref<1xi32, #tpu.memory_space<smem>>
    %c0_i32 = arith.constant 0 : i32
    %c0_i32_0 = arith.constant 0 : i32
    return %arg0, %1, %c0_i32 : i32, i32, i32
  }
  func.func @transform_3(%arg0: i32, %arg1: i32, %arg2: memref<1xi32, #tpu.memory_space<smem>>, %arg3: memref<1xi32, #tpu.memory_space<smem>>, %arg4: memref<1xi32, #tpu.memory_space<smem>>) -> (i32, i32, i32) {
    %0 = arith.index_cast %arg1 : i32 to index
    %1 = memref.load %arg2[%0] : memref<1xi32, #tpu.memory_space<smem>>
    %c0_i32 = arith.constant 0 : i32
    %c0_i32_0 = arith.constant 0 : i32
    return %arg0, %1, %c0_i32 : i32, i32, i32
  }
}

module attributes {stable_mosaic.version = 11 : i64} {
  func.func @_ln_mm_kernel(%arg0: i32, %arg1: i32, %arg2: memref<16x32xbf16, #tpu.memory_space<vmem>>, %arg3: memref<1x32xf32, #tpu.memory_space<vmem>>, %arg4: memref<1x32xf32, #tpu.memory_space<vmem>>, %arg5: memref<32x128xbf16, #tpu.memory_space<vmem>>, %arg6: memref<1x128xf32, #tpu.memory_space<vmem>>, %arg7: memref<16x128xbf16, #tpu.memory_space<vmem>>) attributes {dimension_semantics = [#tpu.dimension_semantics<parallel>, #tpu.dimension_semantics<parallel>], iteration_bounds = array<i64: 1, 1>, scalar_prefetch = 0 : i64, scratch_operands = 0 : i64, tpu.core_type = #tpu.core_type<tc>, window_params = [{transform_indices = @transform_0, window_bounds = array<i64: 16, 32>}, {pipeline_mode = #tpu.pipeline_mode<synchronous>, transform_indices = @transform_1, window_bounds = array<i64: 1, 32>}, {pipeline_mode = #tpu.pipeline_mode<synchronous>, transform_indices = @transform_2, window_bounds = array<i64: 1, 32>}, {transform_indices = @transform_3, window_bounds = array<i64: 32, 128>}, {transform_indices = @transform_4, window_bounds = array<i64: 1, 128>}, {transform_indices = @transform_5, window_bounds = array<i64: 16, 128>}]} {
    %c0 = arith.constant 0 : index
    %c0_0 = arith.constant 0 : index
    %0 = vector.load %arg2[%c0, %c0_0] : memref<16x32xbf16, #tpu.memory_space<vmem>>, vector<16x32xbf16>
    %1 = arith.extf %0 : vector<16x32xbf16> to vector<16x32xf32>
    %cst = arith.constant dense<0.000000e+00> : vector<16xf32>
    %2 = vector.multi_reduction <add>, %1, %cst [1] : vector<16x32xf32> to vector<16xf32>
    %3 = vector.shape_cast %2 : vector<16xf32> to vector<16x1xf32>
    %cst_1 = arith.constant 3.200000e+01 : f32
    %4 = vector.broadcast %cst_1 : f32 to vector<16x1xf32>
    %5 = arith.divf %3, %4 : vector<16x1xf32>
    %6 = vector.broadcast %5 : vector<16x1xf32> to vector<16x32xf32>
    %7 = arith.subf %1, %6 : vector<16x32xf32>
    %8 = arith.mulf %7, %7 : vector<16x32xf32>
    %cst_2 = arith.constant dense<0.000000e+00> : vector<16xf32>
    %9 = vector.multi_reduction <add>, %8, %cst_2 [1] : vector<16x32xf32> to vector<16xf32>
    %10 = vector.shape_cast %9 : vector<16xf32> to vector<16x1xf32>
    %cst_3 = arith.constant 3.200000e+01 : f32
    %11 = vector.broadcast %cst_3 : f32 to vector<16x1xf32>
    %12 = arith.divf %10, %11 : vector<16x1xf32>
    %cst_4 = arith.constant 9.99999974E-6 : f32
    %13 = vector.broadcast %cst_4 : f32 to vector<16x1xf32>
    %14 = arith.addf %12, %13 : vector<16x1xf32>
    %15 = math.rsqrt %14 : vector<16x1xf32>
    %16 = vector.broadcast %15 : vector<16x1xf32> to vector<16x32xf32>
    %17 = arith.mulf %7, %16 : vector<16x32xf32>
    %c0_5 = arith.constant 0 : index
    %c0_6 = arith.constant 0 : index
    %18 = vector.load %arg3[%c0_5, %c0_6] : memref<1x32xf32, #tpu.memory_space<vmem>>, vector<1x32xf32>
    %19 = vector.broadcast %18 : vector<1x32xf32> to vector<16x32xf32>
    %20 = arith.mulf %17, %19 : vector<16x32xf32>
    %c0_7 = arith.constant 0 : index
    %c0_8 = arith.constant 0 : index
    %21 = vector.load %arg4[%c0_7, %c0_8] : memref<1x32xf32, #tpu.memory_space<vmem>>, vector<1x32xf32>
    %22 = vector.broadcast %21 : vector<1x32xf32> to vector<16x32xf32>
    %23 = arith.addf %20, %22 : vector<16x32xf32>
    %24 = arith.truncf %23 : vector<16x32xf32> to vector<16x32xbf16>
    %c0_9 = arith.constant 0 : index
    %c0_10 = arith.constant 0 : index
    %25 = vector.load %arg5[%c0_9, %c0_10] : memref<32x128xbf16, #tpu.memory_space<vmem>>, vector<32x128xbf16>
    %cst_11 = arith.constant dense<0.000000e+00> : vector<16x128xf32>
    %26 = tpu.matmul %24, %25, %cst_11 {dimension_numbers = #tpu.dot_dimension_numbers<[1], [0], [0], [1], [0, 0, 1, 1], [], []>} : vector<16x32xbf16>, vector<32x128xbf16>, vector<16x128xf32> -> vector<16x128xf32>
    %c0_12 = arith.constant 0 : index
    %c0_13 = arith.constant 0 : index
    %27 = vector.load %arg6[%c0_12, %c0_13] : memref<1x128xf32, #tpu.memory_space<vmem>>, vector<1x128xf32>
    %28 = vector.broadcast %27 : vector<1x128xf32> to vector<16x128xf32>
    %29 = arith.addf %26, %28 : vector<16x128xf32>
    %30 = arith.mulf %29, %29 : vector<16x128xf32>
    %31 = arith.mulf %29, %30 : vector<16x128xf32>
    %cst_14 = arith.constant 4.471500e-02 : f32
    %32 = vector.broadcast %cst_14 : f32 to vector<16x128xf32>
    %33 = arith.mulf %32, %31 : vector<16x128xf32>
    %34 = arith.addf %29, %33 : vector<16x128xf32>
    %cst_15 = arith.constant 0.797884583 : f32
    %35 = vector.broadcast %cst_15 : f32 to vector<16x128xf32>
    %36 = arith.mulf %35, %34 : vector<16x128xf32>
    %37 = math.tanh %36 : vector<16x128xf32>
    %cst_16 = arith.constant 1.000000e+00 : f32
    %38 = vector.broadcast %cst_16 : f32 to vector<16x128xf32>
    %39 = arith.addf %38, %37 : vector<16x128xf32>
    %cst_17 = arith.constant 5.000000e-01 : f32
    %40 = vector.broadcast %cst_17 : f32 to vector<16x128xf32>
    %41 = arith.mulf %40, %39 : vector<16x128xf32>
    %42 = arith.mulf %29, %41 : vector<16x128xf32>
    %43 = arith.truncf %42 : vector<16x128xf32> to vector<16x128xbf16>
    %c0_18 = arith.constant 0 : index
    %c0_19 = arith.constant 0 : index
    %44 = vector.load %arg7[%c0_18, %c0_19] : memref<16x128xbf16, #tpu.memory_space<vmem>>, vector<16x128xbf16>
    tpu.vector_store %arg7[%c0_18, %c0_19], %43 {strides = array<i32>} : memref<16x128xbf16, #tpu.memory_space<vmem>>, vector<16x128xbf16>,
    return
  }
  func.func @transform_0(%arg0: i32, %arg1: i32) -> (i32, i32) {
    %c0_i32 = arith.constant 0 : i32
    %c0_i32_0 = arith.constant 0 : i32
    return %arg0, %c0_i32 : i32, i32
  }
  func.func @transform_1(%arg0: i32, %arg1: i32) -> (i32, i32) {
    %c0_i32 = arith.constant 0 : i32
    %c0_i32_0 = arith.constant 0 : i32
    %c0_i32_1 = arith.constant 0 : i32
    return %c0_i32, %c0_i32_0 : i32, i32
  }
  func.func @transform_2(%arg0: i32, %arg1: i32) -> (i32, i32) {
    %c0_i32 = arith.constant 0 : i32
    %c0_i32_0 = arith.constant 0 : i32
    %c0_i32_1 = arith.constant 0 : i32
    return %c0_i32, %c0_i32_0 : i32, i32
  }
  func.func @transform_3(%arg0: i32, %arg1: i32) -> (i32, i32) {
    %c0_i32 = arith.constant 0 : i32
    %c0_i32_0 = arith.constant 0 : i32
    return %c0_i32, %arg1 : i32, i32
  }
  func.func @transform_4(%arg0: i32, %arg1: i32) -> (i32, i32) {
    %c0_i32 = arith.constant 0 : i32
    %c0_i32_0 = arith.constant 0 : i32
    return %c0_i32, %arg1 : i32, i32
  }
  func.func @transform_5(%arg0: i32, %arg1: i32) -> (i32, i32) {
    %c0_i32 = arith.constant 0 : i32
    return %arg0, %arg1 : i32, i32
  }
}

module attributes {stable_mosaic.version = 11 : i64} {
  func.func @_mm_res_kernel(%arg0: i32, %arg1: i32, %arg2: i32, %arg3: memref<16x128xbf16, #tpu.memory_space<vmem>>, %arg4: memref<128x128xbf16, #tpu.memory_space<vmem>>, %arg5: memref<1x128xf32, #tpu.memory_space<vmem>>, %arg6: memref<16x128xbf16, #tpu.memory_space<vmem>>, %arg7: memref<16x128xbf16, #tpu.memory_space<vmem>>, %arg8: memref<16x128xf32, #tpu.memory_space<vmem>>) attributes {dimension_semantics = [#tpu.dimension_semantics<parallel>, #tpu.dimension_semantics<parallel>, #tpu.dimension_semantics<arbitrary>], iteration_bounds = array<i64: 1, 1, 1>, scalar_prefetch = 0 : i64, scratch_operands = 1 : i64, tpu.core_type = #tpu.core_type<tc>, window_params = [{transform_indices = @transform_0, window_bounds = array<i64: 16, 128>}, {transform_indices = @transform_1, window_bounds = array<i64: 128, 128>}, {transform_indices = @transform_2, window_bounds = array<i64: 1, 128>}, {transform_indices = @transform_3, window_bounds = array<i64: 16, 128>}, {transform_indices = @transform_4, window_bounds = array<i64: 16, 128>}]} {
    %c0_i32 = arith.constant 0 : i32
    %0 = arith.cmpi eq, %arg2, %c0_i32 : i32
    %1 = arith.extui %0 : i1 to i32
    %c0_i32_0 = arith.constant 0 : i32
    %2 = arith.cmpi ne, %1, %c0_i32_0 : i32
    scf.if %2 {
      %cst_10 = arith.constant 0.000000e+00 : f32
      %12 = vector.broadcast %cst_10 : f32 to vector<16x128xf32>
      %c0_11 = arith.constant 0 : index
      %c0_12 = arith.constant 0 : index
      %13 = vector.load %arg8[%c0_11, %c0_12] : memref<16x128xf32, #tpu.memory_space<vmem>>, vector<16x128xf32>
      tpu.vector_store %arg8[%c0_11, %c0_12], %12 {strides = array<i32>} : memref<16x128xf32, #tpu.memory_space<vmem>>, vector<16x128xf32>,
    } else {
    }
    %c0 = arith.constant 0 : index
    %c0_1 = arith.constant 0 : index
    %3 = vector.load %arg8[%c0, %c0_1] : memref<16x128xf32, #tpu.memory_space<vmem>>, vector<16x128xf32>
    %c0_2 = arith.constant 0 : index
    %c0_3 = arith.constant 0 : index
    %4 = vector.load %arg3[%c0_2, %c0_3] : memref<16x128xbf16, #tpu.memory_space<vmem>>, vector<16x128xbf16>
    %c0_4 = arith.constant 0 : index
    %c0_5 = arith.constant 0 : index
    %5 = vector.load %arg4[%c0_4, %c0_5] : memref<128x128xbf16, #tpu.memory_space<vmem>>, vector<128x128xbf16>
    %cst = arith.constant dense<0.000000e+00> : vector<16x128xf32>
    %6 = tpu.matmul %4, %5, %cst {dimension_numbers = #tpu.dot_dimension_numbers<[1], [0], [0], [1], [0, 0, 1, 1], [], []>} : vector<16x128xbf16>, vector<128x128xbf16>, vector<16x128xf32> -> vector<16x128xf32>
    %7 = arith.addf %3, %6 : vector<16x128xf32>
    %c0_6 = arith.constant 0 : index
    %c0_7 = arith.constant 0 : index
    %8 = vector.load %arg8[%c0_6, %c0_7] : memref<16x128xf32, #tpu.memory_space<vmem>>, vector<16x128xf32>
    tpu.vector_store %arg8[%c0_6, %c0_7], %7 {strides = array<i32>} : memref<16x128xf32, #tpu.memory_space<vmem>>, vector<16x128xf32>,
    %c0_i32_8 = arith.constant 0 : i32
    %9 = arith.cmpi eq, %arg2, %c0_i32_8 : i32
    %10 = arith.extui %9 : i1 to i32
    %c0_i32_9 = arith.constant 0 : i32
    %11 = arith.cmpi ne, %10, %c0_i32_9 : i32
    scf.if %11 {
      %c0_10 = arith.constant 0 : index
      %c0_11 = arith.constant 0 : index
      %12 = vector.load %arg8[%c0_10, %c0_11] : memref<16x128xf32, #tpu.memory_space<vmem>>, vector<16x128xf32>
      %c0_12 = arith.constant 0 : index
      %c0_13 = arith.constant 0 : index
      %13 = vector.load %arg5[%c0_12, %c0_13] : memref<1x128xf32, #tpu.memory_space<vmem>>, vector<1x128xf32>
      %14 = vector.broadcast %13 : vector<1x128xf32> to vector<16x128xf32>
      %15 = arith.addf %12, %14 : vector<16x128xf32>
      %c0_14 = arith.constant 0 : index
      %c0_15 = arith.constant 0 : index
      %16 = vector.load %arg6[%c0_14, %c0_15] : memref<16x128xbf16, #tpu.memory_space<vmem>>, vector<16x128xbf16>
      %17 = arith.extf %16 : vector<16x128xbf16> to vector<16x128xf32>
      %18 = arith.addf %15, %17 : vector<16x128xf32>
      %19 = arith.truncf %18 : vector<16x128xf32> to vector<16x128xbf16>
      %c0_16 = arith.constant 0 : index
      %c0_17 = arith.constant 0 : index
      %20 = vector.load %arg7[%c0_16, %c0_17] : memref<16x128xbf16, #tpu.memory_space<vmem>>, vector<16x128xbf16>
      tpu.vector_store %arg7[%c0_16, %c0_17], %19 {strides = array<i32>} : memref<16x128xbf16, #tpu.memory_space<vmem>>, vector<16x128xbf16>,
    } else {
    }
    return
  }
  func.func @transform_0(%arg0: i32, %arg1: i32, %arg2: i32) -> (i32, i32) {
    %c0_i32 = arith.constant 0 : i32
    return %arg0, %arg2 : i32, i32
  }
  func.func @transform_1(%arg0: i32, %arg1: i32, %arg2: i32) -> (i32, i32) {
    %c0_i32 = arith.constant 0 : i32
    return %arg2, %arg1 : i32, i32
  }
  func.func @transform_2(%arg0: i32, %arg1: i32, %arg2: i32) -> (i32, i32) {
    %c0_i32 = arith.constant 0 : i32
    %c0_i32_0 = arith.constant 0 : i32
    return %c0_i32, %arg1 : i32, i32
  }
  func.func @transform_3(%arg0: i32, %arg1: i32, %arg2: i32) -> (i32, i32) {
    %c0_i32 = arith.constant 0 : i32
    return %arg0, %arg1 : i32, i32
  }
  func.func @transform_4(%arg0: i32, %arg1: i32, %arg2: i32) -> (i32, i32) {
    %c0_i32 = arith.constant 0 : i32
    return %arg0, %arg1 : i32, i32
  }
}

module attributes {stable_mosaic.version = 11 : i64} {
  func.func @_ln_mm_kernel(%arg0: i32, %arg1: i32, %arg2: memref<16x32xbf16, #tpu.memory_space<vmem>>, %arg3: memref<1x32xf32, #tpu.memory_space<vmem>>, %arg4: memref<1x32xf32, #tpu.memory_space<vmem>>, %arg5: memref<32x128xbf16, #tpu.memory_space<vmem>>, %arg6: memref<1x128xf32, #tpu.memory_space<vmem>>, %arg7: memref<16x128xf32, #tpu.memory_space<vmem>>) attributes {dimension_semantics = [#tpu.dimension_semantics<parallel>, #tpu.dimension_semantics<parallel>], iteration_bounds = array<i64: 1, 1>, scalar_prefetch = 0 : i64, scratch_operands = 0 : i64, tpu.core_type = #tpu.core_type<tc>, window_params = [{transform_indices = @transform_0, window_bounds = array<i64: 16, 32>}, {pipeline_mode = #tpu.pipeline_mode<synchronous>, transform_indices = @transform_1, window_bounds = array<i64: 1, 32>}, {pipeline_mode = #tpu.pipeline_mode<synchronous>, transform_indices = @transform_2, window_bounds = array<i64: 1, 32>}, {transform_indices = @transform_3, window_bounds = array<i64: 32, 128>}, {transform_indices = @transform_4, window_bounds = array<i64: 1, 128>}, {transform_indices = @transform_5, window_bounds = array<i64: 16, 128>}]} {
    %c0 = arith.constant 0 : index
    %c0_0 = arith.constant 0 : index
    %0 = vector.load %arg2[%c0, %c0_0] : memref<16x32xbf16, #tpu.memory_space<vmem>>, vector<16x32xbf16>
    %1 = arith.extf %0 : vector<16x32xbf16> to vector<16x32xf32>
    %cst = arith.constant dense<0.000000e+00> : vector<16xf32>
    %2 = vector.multi_reduction <add>, %1, %cst [1] : vector<16x32xf32> to vector<16xf32>
    %3 = vector.shape_cast %2 : vector<16xf32> to vector<16x1xf32>
    %cst_1 = arith.constant 3.200000e+01 : f32
    %4 = vector.broadcast %cst_1 : f32 to vector<16x1xf32>
    %5 = arith.divf %3, %4 : vector<16x1xf32>
    %6 = vector.broadcast %5 : vector<16x1xf32> to vector<16x32xf32>
    %7 = arith.subf %1, %6 : vector<16x32xf32>
    %8 = arith.mulf %7, %7 : vector<16x32xf32>
    %cst_2 = arith.constant dense<0.000000e+00> : vector<16xf32>
    %9 = vector.multi_reduction <add>, %8, %cst_2 [1] : vector<16x32xf32> to vector<16xf32>
    %10 = vector.shape_cast %9 : vector<16xf32> to vector<16x1xf32>
    %cst_3 = arith.constant 3.200000e+01 : f32
    %11 = vector.broadcast %cst_3 : f32 to vector<16x1xf32>
    %12 = arith.divf %10, %11 : vector<16x1xf32>
    %cst_4 = arith.constant 9.99999974E-6 : f32
    %13 = vector.broadcast %cst_4 : f32 to vector<16x1xf32>
    %14 = arith.addf %12, %13 : vector<16x1xf32>
    %15 = math.rsqrt %14 : vector<16x1xf32>
    %16 = vector.broadcast %15 : vector<16x1xf32> to vector<16x32xf32>
    %17 = arith.mulf %7, %16 : vector<16x32xf32>
    %c0_5 = arith.constant 0 : index
    %c0_6 = arith.constant 0 : index
    %18 = vector.load %arg3[%c0_5, %c0_6] : memref<1x32xf32, #tpu.memory_space<vmem>>, vector<1x32xf32>
    %19 = vector.broadcast %18 : vector<1x32xf32> to vector<16x32xf32>
    %20 = arith.mulf %17, %19 : vector<16x32xf32>
    %c0_7 = arith.constant 0 : index
    %c0_8 = arith.constant 0 : index
    %21 = vector.load %arg4[%c0_7, %c0_8] : memref<1x32xf32, #tpu.memory_space<vmem>>, vector<1x32xf32>
    %22 = vector.broadcast %21 : vector<1x32xf32> to vector<16x32xf32>
    %23 = arith.addf %20, %22 : vector<16x32xf32>
    %24 = arith.truncf %23 : vector<16x32xf32> to vector<16x32xbf16>
    %c0_9 = arith.constant 0 : index
    %c0_10 = arith.constant 0 : index
    %25 = vector.load %arg5[%c0_9, %c0_10] : memref<32x128xbf16, #tpu.memory_space<vmem>>, vector<32x128xbf16>
    %cst_11 = arith.constant dense<0.000000e+00> : vector<16x128xf32>
    %26 = tpu.matmul %24, %25, %cst_11 {dimension_numbers = #tpu.dot_dimension_numbers<[1], [0], [0], [1], [0, 0, 1, 1], [], []>} : vector<16x32xbf16>, vector<32x128xbf16>, vector<16x128xf32> -> vector<16x128xf32>
    %c0_12 = arith.constant 0 : index
    %c0_13 = arith.constant 0 : index
    %27 = vector.load %arg6[%c0_12, %c0_13] : memref<1x128xf32, #tpu.memory_space<vmem>>, vector<1x128xf32>
    %28 = vector.broadcast %27 : vector<1x128xf32> to vector<16x128xf32>
    %29 = arith.addf %26, %28 : vector<16x128xf32>
    %c0_14 = arith.constant 0 : index
    %c0_15 = arith.constant 0 : index
    %30 = vector.load %arg7[%c0_14, %c0_15] : memref<16x128xf32, #tpu.memory_space<vmem>>, vector<16x128xf32>
    tpu.vector_store %arg7[%c0_14, %c0_15], %29 {strides = array<i32>} : memref<16x128xf32, #tpu.memory_space<vmem>>, vector<16x128xf32>,
    return
  }
  func.func @transform_0(%arg0: i32, %arg1: i32) -> (i32, i32) {
    %c0_i32 = arith.constant 0 : i32
    %c0_i32_0 = arith.constant 0 : i32
    return %arg0, %c0_i32 : i32, i32
  }
  func.func @transform_1(%arg0: i32, %arg1: i32) -> (i32, i32) {
    %c0_i32 = arith.constant 0 : i32
    %c0_i32_0 = arith.constant 0 : i32
    %c0_i32_1 = arith.constant 0 : i32
    return %c0_i32, %c0_i32_0 : i32, i32
  }
  func.func @transform_2(%arg0: i32, %arg1: i32) -> (i32, i32) {
    %c0_i32 = arith.constant 0 : i32
    %c0_i32_0 = arith.constant 0 : i32
    %c0_i32_1 = arith.constant 0 : i32
    return %c0_i32, %c0_i32_0 : i32, i32
  }
  func.func @transform_3(%arg0: i32, %arg1: i32) -> (i32, i32) {
    %c0_i32 = arith.constant 0 : i32
    %c0_i32_0 = arith.constant 0 : i32
    return %c0_i32, %arg1 : i32, i32
  }
  func.func @transform_4(%arg0: i32, %arg1: i32) -> (i32, i32) {
    %c0_i32 = arith.constant 0 : i32
    %c0_i32_0 = arith.constant 0 : i32
    return %c0_i32, %arg1 : i32, i32
  }
  func.func @transform_5(%arg0: i32, %arg1: i32) -> (i32, i32) {
    %c0_i32 = arith.constant 0 : i32
    return %arg0, %arg1 : i32, i32
  }
}

</mosaic_0001>

<llo_original>
// kernel: _lambda_.11
$region0: #{_lambda_.11}
  #allocation0 [shape = 'u32[]', space=smem, size = 0x4, offset = 0x4, fixed_abs, tag = 'smem constant byte address 0x4 - core index']
  #allocation1 [shape = 'u32[72,128]{1,0:T(1,128)}', space=vmem, size = 0x9000, scoped, tag = 'internal scratch']
  %s0 = inlined_call_operand.vmem [shape: bf16[16,32], index: 0, kind: input, shape index: {}]
  %s1 = inlined_call_operand.vmem [shape: f32[1,32], index: 1, kind: input, shape index: {}]
  %s2 = inlined_call_operand.vmem [shape: f32[1,32], index: 2, kind: input, shape index: {}]
  %s3 = inlined_call_operand.vmem [shape: bf16[32,128], index: 3, kind: input, shape index: {}]
  %s4 = inlined_call_operand.vmem [shape: f32[1,128], index: 4, kind: input, shape index: {}]
  %s5 = inlined_call_operand.vmem [shape: bf16[16,128], index: 5, kind: output, shape index: {}]
  %s6 = sld [smem:[#allocation0]]
  $region30: #{_lambda_.11} parent=0
    _
  %s8 = ssub.s32 1, %s6
  %s9 = scalar_select 0, %s8, %s6
  // Predicated region
  $region2: #{_lambda_.11} parent=0 // pred_check
    _
  $region3: #{_lambda_.11} parent=0 // pred_check_branch
    %11 = sbr.rel (0) target = $region5
  $region4: #{_lambda_.11} parent=0 // pred_region
    _
  $region5: #{_lambda_.11} parent=0 // pred_fallthru
    _
  // Predicated region
  $region6: #{_lambda_.11} parent=0 // pred_check
    _
  $region7: #{_lambda_.11} parent=0 // pred_check_branch
    %13 = sbr.rel (0) target = $region9
  $region8: #{_lambda_.11} parent=0 // pred_region
    _
  $region9: #{_lambda_.11} parent=0 // pred_fallthru
    _
  // Predicated region
  $region10: #{_lambda_.11} parent=0 // pred_check
    _
  $region11: #{_lambda_.11} parent=0 // pred_check_branch
    %15 = sbr.rel (0) target = $region13
  $region12: #{_lambda_.11} parent=0 // pred_region
    _
  $region13: #{_lambda_.11} parent=0 // pred_fallthru
    _
  // Predicated region
  $region14: #{_lambda_.11} parent=0 // pred_check
    _
  $region15: #{_lambda_.11} parent=0 // pred_check_branch
    %17 = sbr.rel (0) target = $region17
  $region16: #{_lambda_.11} parent=0 // pred_region
    _
  $region17: #{_lambda_.11} parent=0 // pred_fallthru
    _
  // Predicated region
  $region18: #{_lambda_.11} parent=0 // pred_check
    _
  $region19: #{_lambda_.11} parent=0 // pred_check_branch
    %19 = sbr.rel (0) target = $region21
  $region20: #{_lambda_.11} parent=0 // pred_region
    _
  $region21: #{_lambda_.11} parent=0 // pred_fallthru
    _
  %v21 = vld [vmem:[%s0] sm:$0xf]
  %v22 = vld [vmem:[%s0 + $0x4] sm:$0xf]
  %v23 = vunpack.c.l.bf16 %v21
  %v24 = vunpack.c.l.bf16 %v22
  %vm25 = vcmask 261120
  %v26 = vsel %vm25, %v23, 0.0
  %27 = vadd.xlane.f32.xlu0 %v26
  %v28 = vpop.xlane.xlu0 %27
  %v29 = vsel %vm25, %v24, 0.0
  %30 = vadd.xlane.f32.xlu0 %v29
  %v31 = vpop.xlane.xlu0 %30
  %v32 = vrcp.pop 32.0
  %v33 = vmul.f32 32.0, %v32
  %v34 = vsub.f32 1.0, %v33
  %v35 = vmul.f32 %v32, %v34
  %v36 = vadd.f32 %v32, %v35
  %vm37 = vweird.f32 %v32
  %v38 = vsel %vm37, %v32, %v36
  %v39 = vmul.f32 %v28, %v38
  %v40 = vmul.f32 %v31, %v38
  %v41 = vsub.f32 %v23, %v39
  %v42 = vsub.f32 %v24, %v40
  %v43 = vmul.f32 %v41, %v41
  %v44 = vmul.f32 %v42, %v42
  %v45 = vsel %vm25, %v43, 0.0
  %46 = vadd.xlane.f32.xlu0 %v45
  %v47 = vpop.xlane.xlu0 %46
  %v48 = vsel %vm25, %v44, 0.0
  %49 = vadd.xlane.f32.xlu0 %v48
  %v50 = vpop.xlane.xlu0 %49
  %v51 = vmul.f32 %v47, %v38
  %v52 = vmul.f32 %v50, %v38
  %v53 = vadd.f32 %v51, 1e-05
  %v54 = vadd.f32 %v52, 1e-05
  %v55 = vrsqrt.pop %v53
  %v56 = vmul.f32 %v55, %v53
  %v57 = vmul.f32 %v56, %v55
  %v58 = vmul.f32 0.5, %v57
  %v59 = vsub.f32 1.5, %v58
  %v60 = vmul.f32 %v55, %v59
  %vm61 = vweird.f32 %v53
  %vm62 = vweird.f32 %v55
  %vm63 = vmor %vm61, %vm62
  %v64 = vsel %vm63, %v55, %v60
  %v65 = vrsqrt.pop %v54
  %v66 = vmul.f32 %v65, %v54
  %v67 = vmul.f32 %v66, %v65
  %v68 = vmul.f32 0.5, %v67
  %v69 = vsub.f32 1.5, %v68
  %v70 = vmul.f32 %v65, %v69
  %vm71 = vweird.f32 %v54
  %vm72 = vweird.f32 %v65
  %vm73 = vmor %vm71, %vm72
  %v74 = vsel %vm73, %v65, %v70
  %v75 = vmul.f32 %v41, %v64
  %v76 = vmul.f32 %v42, %v74
  %v77 = vld [vmem:[%s1] sm:$0x1]
  %v79 = vperm.slane %v77, 0
  %v81 = vmul.f32 %v75, %v79
  %v82 = vmul.f32 %v76, %v79
  %v83 = vld [vmem:[%s2] sm:$0x1]
  %v85 = vperm.slane %v83, 0
  %v87 = vadd.f32 %v81, %v85
  %v88 = vadd.f32 %v82, %v85
  %v89 = vpack.c.bf16 %v88, %v87
  %v90 = vld [vmem:[%s3] sm:$0xf]
  %v91 = vld [vmem:[%s3 + $0x4] sm:$0xf]
  %v92 = vld [vmem:[%s3 + $0x8] sm:$0xf]
  %v93 = vld [vmem:[%s3 + $0xc] sm:$0xf]
  %v94 = vld [vmem:[%s4] sm:$0x1]
  %v96 = vperm.slane %v94, 0
  %v102 = vunpack.c.l.b16 %v90
  %v103 = vunpack.c.l.b16 %v91
  %v104 = vunpack.c.l.b16 %v92
  %v105 = vunpack.c.l.b16 %v93
  %v106 = vpack.c.b16 %v103, %v102
  %v107 = vpack.c.b16 %v105, %v104
  %v111 = vsel %vm25, %v89, 0
  %113 = vmatpush.bf16.msra.mxu0 0
  %114 = vmatpush.bf16.msra.mxu0 0
  %115 = vmatpush.bf16.msra.mxu0 0
  %116 = vmatpush.bf16.msra.mxu0 0
  %117 = vmatpush.bf16.msra.mxu0 0
  %118 = vmatpush.bf16.msra.mxu0 0
  %119 = vmatpush.bf16.msra.mxu0 %v107
  %120 = vmatpush.bf16.msra.mxu0 %v106
  %121 = vmatmul.bf16.gmra.mxu0 %v111
  %v122 = vpop.f32.mrf.mxu0
  %v123 = vadd.f32 %v96, %v122
  %v124 = vpop.f32.mrf.mxu0
  %v125 = vadd.f32 %v96, %v124
  %126 = vdwg.mxu0
  %v127 = vpack.c.bf16 %v123, %v123
  %v128 = vpack.c.bf16 %v125, %v125
  %129 = vst [vmem:[%s5] sm:$0xf] %v127
  %130 = vst [vmem:[%s5 + $0x4] sm:$0xf] %v128
  // Predicated region
  $region22: #{_lambda_.11} parent=0 // pred_check
    _
  $region23: #{_lambda_.11} parent=0 // pred_check_branch
    %132 = sbr.rel (0) target = $region25
  $region24: #{_lambda_.11} parent=0 // pred_region
    _
  $region25: #{_lambda_.11} parent=0 // pred_fallthru
    _
  // Predicated region
  $region26: #{_lambda_.11} parent=0 // pred_check
    _
  $region27: #{_lambda_.11} parent=0 // pred_check_branch
    %134 = sbr.rel (0) target = $region29
  $region28: #{_lambda_.11} parent=0 // pred_region
    _
  $region29: #{_lambda_.11} parent=0 // pred_fallthru
    _

// kernel: _lambda_.14
$region0: #{_lambda_.14}
  #allocation0 [shape = 'u32[]', space=smem, size = 0x4, offset = 0x4, fixed_abs, tag = 'smem constant byte address 0x4 - core index']
  #allocation1 [shape = 'u32[72,128]{1,0:T(1,128)}', space=vmem, size = 0x9000, scoped, tag = 'internal scratch']
  %s0 = inlined_call_operand.vmem [shape: bf16[16,32], index: 0, kind: input, shape index: {}]
  %s1 = inlined_call_operand.vmem [shape: f32[1,32], index: 1, kind: input, shape index: {}]
  %s2 = inlined_call_operand.vmem [shape: f32[1,32], index: 2, kind: input, shape index: {}]
  %s3 = inlined_call_operand.vmem [shape: bf16[32,128], index: 3, kind: input, shape index: {}]
  %s4 = inlined_call_operand.vmem [shape: f32[1,128], index: 4, kind: input, shape index: {}]
  %s5 = inlined_call_operand.vmem [shape: bf16[16,128], index: 5, kind: output, shape index: {}]
  %s6 = sld [smem:[#allocation0]]
  $region30: #{_lambda_.14} parent=0
    _
  %s8 = ssub.s32 1, %s6
  %s9 = scalar_select 0, %s8, %s6
  // Predicated region
  $region2: #{_lambda_.14} parent=0 // pred_check
    _
  $region3: #{_lambda_.14} parent=0 // pred_check_branch
    %11 = sbr.rel (0) target = $region5
  $region4: #{_lambda_.14} parent=0 // pred_region
    _
  $region5: #{_lambda_.14} parent=0 // pred_fallthru
    _
  // Predicated region
  $region6: #{_lambda_.14} parent=0 // pred_check
    _
  $region7: #{_lambda_.14} parent=0 // pred_check_branch
    %13 = sbr.rel (0) target = $region9
  $region8: #{_lambda_.14} parent=0 // pred_region
    _
  $region9: #{_lambda_.14} parent=0 // pred_fallthru
    _
  // Predicated region
  $region10: #{_lambda_.14} parent=0 // pred_check
    _
  $region11: #{_lambda_.14} parent=0 // pred_check_branch
    %15 = sbr.rel (0) target = $region13
  $region12: #{_lambda_.14} parent=0 // pred_region
    _
  $region13: #{_lambda_.14} parent=0 // pred_fallthru
    _
  // Predicated region
  $region14: #{_lambda_.14} parent=0 // pred_check
    _
  $region15: #{_lambda_.14} parent=0 // pred_check_branch
    %17 = sbr.rel (0) target = $region17
  $region16: #{_lambda_.14} parent=0 // pred_region
    _
  $region17: #{_lambda_.14} parent=0 // pred_fallthru
    _
  // Predicated region
  $region18: #{_lambda_.14} parent=0 // pred_check
    _
  $region19: #{_lambda_.14} parent=0 // pred_check_branch
    %19 = sbr.rel (0) target = $region21
  $region20: #{_lambda_.14} parent=0 // pred_region
    _
  $region21: #{_lambda_.14} parent=0 // pred_fallthru
    _
  %v21 = vld [vmem:[%s0] sm:$0xf]
  %v22 = vld [vmem:[%s0 + $0x4] sm:$0xf]
  %v23 = vunpack.c.l.bf16 %v21
  %v24 = vunpack.c.l.bf16 %v22
  %vm25 = vcmask 261120
  %v26 = vsel %vm25, %v23, 0.0
  %27 = vadd.xlane.f32.xlu0 %v26
  %v28 = vpop.xlane.xlu0 %27
  %v29 = vsel %vm25, %v24, 0.0
  %30 = vadd.xlane.f32.xlu0 %v29
  %v31 = vpop.xlane.xlu0 %30
  %v32 = vrcp.pop 32.0
  %v33 = vmul.f32 32.0, %v32
  %v34 = vsub.f32 1.0, %v33
  %v35 = vmul.f32 %v32, %v34
  %v36 = vadd.f32 %v32, %v35
  %vm37 = vweird.f32 %v32
  %v38 = vsel %vm37, %v32, %v36
  %v39 = vmul.f32 %v28, %v38
  %v40 = vmul.f32 %v31, %v38
  %v41 = vsub.f32 %v23, %v39
  %v42 = vsub.f32 %v24, %v40
  %v43 = vmul.f32 %v41, %v41
  %v44 = vmul.f32 %v42, %v42
  %v45 = vsel %vm25, %v43, 0.0
  %46 = vadd.xlane.f32.xlu0 %v45
  %v47 = vpop.xlane.xlu0 %46
  %v48 = vsel %vm25, %v44, 0.0
  %49 = vadd.xlane.f32.xlu0 %v48
  %v50 = vpop.xlane.xlu0 %49
  %v51 = vmul.f32 %v47, %v38
  %v52 = vmul.f32 %v50, %v38
  %v53 = vadd.f32 %v51, 1e-05
  %v54 = vadd.f32 %v52, 1e-05
  %v55 = vrsqrt.pop %v53
  %v56 = vmul.f32 %v55, %v53
  %v57 = vmul.f32 %v56, %v55
  %v58 = vmul.f32 0.5, %v57
  %v59 = vsub.f32 1.5, %v58
  %v60 = vmul.f32 %v55, %v59
  %vm61 = vweird.f32 %v53
  %vm62 = vweird.f32 %v55
  %vm63 = vmor %vm61, %vm62
  %v64 = vsel %vm63, %v55, %v60
  %v65 = vrsqrt.pop %v54
  %v66 = vmul.f32 %v65, %v54
  %v67 = vmul.f32 %v66, %v65
  %v68 = vmul.f32 0.5, %v67
  %v69 = vsub.f32 1.5, %v68
  %v70 = vmul.f32 %v65, %v69
  %vm71 = vweird.f32 %v54
  %vm72 = vweird.f32 %v65
  %vm73 = vmor %vm71, %vm72
  %v74 = vsel %vm73, %v65, %v70
  %v75 = vmul.f32 %v41, %v64
  %v76 = vmul.f32 %v42, %v74
  %v77 = vld [vmem:[%s1] sm:$0x1]
  %v79 = vperm.slane %v77, 0
  %v81 = vmul.f32 %v75, %v79
  %v82 = vmul.f32 %v76, %v79
  %v83 = vld [vmem:[%s2] sm:$0x1]
  %v85 = vperm.slane %v83, 0
  %v87 = vadd.f32 %v81, %v85
  %v88 = vadd.f32 %v82, %v85
  %v89 = vpack.c.bf16 %v88, %v87
  %v90 = vld [vmem:[%s3] sm:$0xf]
  %v91 = vld [vmem:[%s3 + $0x4] sm:$0xf]
  %v92 = vld [vmem:[%s3 + $0x8] sm:$0xf]
  %v93 = vld [vmem:[%s3 + $0xc] sm:$0xf]
  %v94 = vld [vmem:[%s4] sm:$0x1]
  %v96 = vperm.slane %v94, 0
  %v102 = vunpack.c.l.b16 %v90
  %v103 = vunpack.c.l.b16 %v91
  %v104 = vunpack.c.l.b16 %v92
  %v105 = vunpack.c.l.b16 %v93
  %v106 = vpack.c.b16 %v103, %v102
  %v107 = vpack.c.b16 %v105, %v104
  %v111 = vsel %vm25, %v89, 0
  %113 = vmatpush.bf16.msra.mxu0 0
  %114 = vmatpush.bf16.msra.mxu0 0
  %115 = vmatpush.bf16.msra.mxu0 0
  %116 = vmatpush.bf16.msra.mxu0 0
  %117 = vmatpush.bf16.msra.mxu0 0
  %118 = vmatpush.bf16.msra.mxu0 0
  %119 = vmatpush.bf16.msra.mxu0 %v107
  %120 = vmatpush.bf16.msra.mxu0 %v106
  %121 = vmatmul.bf16.gmra.mxu0 %v111
  %v122 = vpop.f32.mrf.mxu0
  %v123 = vadd.f32 %v96, %v122
  %v124 = vpop.f32.mrf.mxu0
  %v125 = vadd.f32 %v96, %v124
  %126 = vdwg.mxu0
  %v127 = vmul.f32 %v123, %v123
  %v128 = vmul.f32 %v125, %v125
  %v129 = vmul.f32 %v123, %v127
  %v130 = vmul.f32 %v125, %v128
  %v131 = vmul.f32 %v129, 0.044715
  %v132 = vmul.f32 %v130, 0.044715
  %v133 = vadd.f32 %v123, %v131
  %v134 = vadd.f32 %v125, %v132
  %v135 = vmul.f32 %v133, 0.7978846
  %v136 = vmul.f32 %v134, 0.7978846
  %v137 = vtanh.pop %v135
  %v138 = vtanh.pop %v136
  %v139 = vadd.f32 %v137, 1.0
  %v140 = vadd.f32 %v138, 1.0
  %v141 = vmul.f32 %v139, 0.5
  %v142 = vmul.f32 %v140, 0.5
  %v143 = vmul.f32 %v123, %v141
  %v144 = vmul.f32 %v125, %v142
  %v145 = vpack.c.bf16 %v143, %v143
  %v146 = vpack.c.bf16 %v144, %v144
  %147 = vst [vmem:[%s5] sm:$0xf] %v145
  %148 = vst [vmem:[%s5 + $0x4] sm:$0xf] %v146
  // Predicated region
  $region22: #{_lambda_.14} parent=0 // pred_check
    _
  $region23: #{_lambda_.14} parent=0 // pred_check_branch
    %150 = sbr.rel (0) target = $region25
  $region24: #{_lambda_.14} parent=0 // pred_region
    _
  $region25: #{_lambda_.14} parent=0 // pred_fallthru
    _
  // Predicated region
  $region26: #{_lambda_.14} parent=0 // pred_check
    _
  $region27: #{_lambda_.14} parent=0 // pred_check_branch
    %152 = sbr.rel (0) target = $region29
  $region28: #{_lambda_.14} parent=0 // pred_region
    _
  $region29: #{_lambda_.14} parent=0 // pred_fallthru
    _

// kernel: _lambda_.12
$region0: #{_lambda_.12}
  #allocation0 [shape = 'u32[]', space=smem, size = 0x4, offset = 0x4, fixed_abs, tag = 'smem constant byte address 0x4 - core index']
  #allocation1 [shape = 'u32[72,128]{1,0:T(1,128)}', space=vmem, size = 0x9000, scoped, tag = 'internal scratch']
  #allocation2 [shape = 'f32[8,1]{1,0:T(8,128)}', space=vmem, size = 0x1000, scoped, tag = 'scratch operand']
  #allocation3 [shape = 'f32[8,1]{1,0:T(8,128)}', space=vmem, size = 0x1000, scoped, tag = 'scratch operand']
  #allocation4 [shape = 'f32[8,8]{1,0:T(8,128)}', space=vmem, size = 0x1000, scoped, tag = 'scratch operand']
  #allocation5 [shape = 's32[1]{0}', space=sflag, size = 0x4, scoped, tag = 'scoped memory for _lambda_.12']
  #allocation6 [shape = 's32[1]{0:T(128)S(6)}', space=smem, size = 0x200, scoped, tag = 'prefetched SMEM operand 0']
  #allocation7 [shape = 's32[1]{0:T(128)S(6)}', space=smem, size = 0x200, scoped, tag = 'prefetched SMEM operand 1']
  #allocation8 [shape = 's32[1]{0:T(128)S(6)}', space=smem, size = 0x200, scoped, tag = 'prefetched SMEM operand 2']
  %s0 = inlined_call_operand.<no memory space> [shape: s32[1], index: 0, kind: input, shape index: {}, may-alias: {0,1}]
  %s1 = inlined_call_operand.<no memory space> [shape: s32[1], index: 1, kind: input, shape index: {}, may-alias: {0,1}]
  %s2 = inlined_call_operand.<no memory space> [shape: s32[1], index: 2, kind: input, shape index: {}]
  %s3 = inlined_call_operand.vmem [shape: bf16[8,8,8], index: 3, kind: input, shape index: {}]
  %s4 = inlined_call_operand.vmem [shape: bf16[8,8,8], index: 4, kind: input, shape index: {}]
  %s5 = inlined_call_operand.vmem [shape: bf16[8,8,8], index: 5, kind: input, shape index: {}]
  %s6 = inlined_call_operand.vmem [shape: bf16[8,8,8], index: 6, kind: output, shape index: {}]
  %s7 = sld [smem:[#allocation0]]
  $region61: #{_lambda_.12} parent=0
    _
  %s9 = ssub.s32 1, %s7
  %s10 = scalar_select 0, %s9, %s7
  %11 = sst [smem:[#allocation6]] %s0
  %12 = sst [smem:[#allocation7]] %s1
  %13 = sst [smem:[#allocation8]] %s2
  loop: start=0, step=1, limit=10
  $region2: #{_lambda_.12} parent=0 // loop_pre_header
    _
  $region3: #{_lambda_.12} parent=0 // loop_header
    %s15 = sphi 0, %s19
    %p16 = scmp.ge.s32.totalorder %s15, 10
    %s22 = sphi 0, %s34
    %s23 = sphi 0, %s30
    %s24 = sphi 0, %s22
    %s25 = sphi 0, %s23
    %s26 = sphi 0, %s24
    %s27 = sphi 0, %s25
    %s41 = sphi 0, %s43
    %s44 = sphi 0, %s41
    %s45 = sphi 0, %s44
    %s61 = sphi 0, %s45
    %s71 = sphi 0, %s73
    %s74 = sphi 0, %s71
    %s75 = sphi 0, %s74
    %s91 = sphi 0, %s75
    %s101 = sphi 0, %s103
    %s104 = sphi 0, %s101
    %s105 = sphi 0, %s104
    %s121 = sphi 0, %s105
    %s131 = sphi 0, %s133
    %s134 = sphi 0, %s131
    %s135 = sphi 0, %s134
    %s151 = sphi 0, %s135
  $region4: #{_lambda_.12} parent=0 // loop_header_branch
    %18 = sbr.rel (%p16) target = $region8
  $region5: #{_lambda_.12} parent=0 // loop_body
    %s20 = ssub.s32 %s15, 1
    %s21 = ssub.s32 %s15, 2
    %s28 = sadd.s32 1, %s23
    %p29 = scmp.ge.s32.totalorder %s28, 1
    %s30 = scalar_select %p29, 0, %s28
    %s31 = sadd.s32 1, %s22
    %s32 = scalar_select %p29, %s31, %s22
    %p33 = scmp.ge.s32.totalorder %s32, 8
    %s34 = scalar_select %p33, 0, %s32
    %s35 = sld [smem:[#allocation6 + %s23]]
    %s36 = sld [smem:[#allocation6 + %s30]]
    %s37 = ssub.s32 %s22, %s34
    %s38 = ssub.s32 %s35, %s36
    %s39 = sor.u32 %s37, %s38
    %p40 = scmp.eq.s32.totalorder %s39, 0
    %s42 = sadd.s32 %s41, 1
    %s43 = scalar_select %p40, %s41, %s42
    %p46 = pneg %p40
    %p47 = scmp.eq.s32.totalorder %s15, 7
    %p48 = por %p46, %p47
    %p49 = scmp.ne.s32.totalorder %s41, %s44
    %p50 = scmp.eq.s32.totalorder %s15, 0
    %p51 = por %p49, %p50
    %p52 = scmp.ne.s32.totalorder %s41, %s44
    %p53 = scmp.eq.s32.totalorder %s20, 7
    %p54 = por %p52, %p53
    %p55 = scmp.ne.s32.totalorder %s44, %s45
    %p56 = scmp.eq.s32.totalorder %s20, 0
    %p57 = por %p55, %p56
    %p58 = scmp.ne.s32.totalorder %s44, %s45
    %p59 = scmp.eq.s32.totalorder %s21, 7
    %p60 = por %p58, %p59
    %p62 = scmp.ne.s32.totalorder %s45, %s61
    %p63 = scmp.eq.s32.totalorder %s21, 0
    %p64 = por %p62, %p63
    %s65 = sld [smem:[#allocation7 + %s23]]
    %s66 = sld [smem:[#allocation7 + %s30]]
    %s67 = ssub.s32 %s22, %s34
    %s68 = ssub.s32 %s65, %s66
    %s69 = sor.u32 %s67, %s68
    %p70 = scmp.eq.s32.totalorder %s69, 0
    %s72 = sadd.s32 %s71, 1
    %s73 = scalar_select %p70, %s71, %s72
    %p76 = pneg %p70
    %p77 = scmp.eq.s32.totalorder %s15, 7
    %p78 = por %p76, %p77
    %p79 = scmp.ne.s32.totalorder %s71, %s74
    %p80 = scmp.eq.s32.totalorder %s15, 0
    %p81 = por %p79, %p80
    %p82 = scmp.ne.s32.totalorder %s71, %s74
    %p83 = scmp.eq.s32.totalorder %s20, 7
    %p84 = por %p82, %p83
    %p85 = scmp.ne.s32.totalorder %s74, %s75
    %p86 = scmp.eq.s32.totalorder %s20, 0
    %p87 = por %p85, %p86
    %p88 = scmp.ne.s32.totalorder %s74, %s75
    %p89 = scmp.eq.s32.totalorder %s21, 7
    %p90 = por %p88, %p89
    %p92 = scmp.ne.s32.totalorder %s75, %s91
    %p93 = scmp.eq.s32.totalorder %s21, 0
    %p94 = por %p92, %p93
    %s95 = sld [smem:[#allocation7 + %s23]]
    %s96 = sld [smem:[#allocation7 + %s30]]
    %s97 = ssub.s32 %s22, %s34
    %s98 = ssub.s32 %s95, %s96
    %s99 = sor.u32 %s97, %s98
    %p100 = scmp.eq.s32.totalorder %s99, 0
    %s102 = sadd.s32 %s101, 1
    %s103 = scalar_select %p100, %s101, %s102
    %p106 = pneg %p100
    %p107 = scmp.eq.s32.totalorder %s15, 7
    %p108 = por %p106, %p107
    %p109 = scmp.ne.s32.totalorder %s101, %s104
    %p110 = scmp.eq.s32.totalorder %s15, 0
    %p111 = por %p109, %p110
    %p112 = scmp.ne.s32.totalorder %s101, %s104
    %p113 = scmp.eq.s32.totalorder %s20, 7
    %p114 = por %p112, %p113
    %p115 = scmp.ne.s32.totalorder %s104, %s105
    %p116 = scmp.eq.s32.totalorder %s20, 0
    %p117 = por %p115, %p116
    %p118 = scmp.ne.s32.totalorder %s104, %s105
    %p119 = scmp.eq.s32.totalorder %s21, 7
    %p120 = por %p118, %p119
    %p122 = scmp.ne.s32.totalorder %s105, %s121
    %p123 = scmp.eq.s32.totalorder %s21, 0
    %p124 = por %p122, %p123
    %s125 = sld [smem:[#allocation6 + %s23]]
    %s126 = sld [smem:[#allocation6 + %s30]]
    %s127 = ssub.s32 %s22, %s34
    %s128 = ssub.s32 %s125, %s126
    %s129 = sor.u32 %s127, %s128
    %p130 = scmp.eq.s32.totalorder %s129, 0
    %s132 = sadd.s32 %s131, 1
    %s133 = scalar_select %p130, %s131, %s132
    %p136 = pneg %p130
    %p137 = scmp.eq.s32.totalorder %s15, 7
    %p138 = por %p136, %p137
    %p139 = scmp.ne.s32.totalorder %s131, %s134
    %p140 = scmp.eq.s32.totalorder %s15, 0
    %p141 = por %p139, %p140
    %p142 = scmp.ne.s32.totalorder %s131, %s134
    %p143 = scmp.eq.s32.totalorder %s20, 7
    %p144 = por %p142, %p143
    %p145 = scmp.ne.s32.totalorder %s134, %s135
    %p146 = scmp.eq.s32.totalorder %s20, 0
    %p147 = por %p145, %p146
    %p148 = scmp.ne.s32.totalorder %s134, %s135
    %p149 = scmp.eq.s32.totalorder %s21, 7
    %p150 = por %p148, %p149
    %p152 = scmp.ne.s32.totalorder %s135, %s151
    %p153 = scmp.eq.s32.totalorder %s21, 0
    %p154 = por %p152, %p153
    %p155 = scmp.le.s32.totalorder 1, %s15
    %p156 = scmp.lt.s32.totalorder %s15, 9
    %p157 = pnand %p155, %p156
    %p158 = pneg %p157
    // Predicated region
    $region9: #{_lambda_.12} parent=5 // pred_check
      _
    $region10: #{_lambda_.12} parent=5 // pred_check_branch
      %160 = sbr.rel (%p157) target = $region12
    $region11: #{_lambda_.12} parent=5 // pred_region
      %s161 = ssub.s32 %s15, 1
    $region12: #{_lambda_.12} parent=5 // pred_fallthru
      _
    %p162 = scmp.lt.s32.totalorder %s15, 8
    // Predicated region
    $region13: #{_lambda_.12} parent=5 // pred_check
      %p163 = pneg %p162
    $region14: #{_lambda_.12} parent=5 // pred_check_branch
      %165 = sbr.rel (%p163) target = $region16
    $region15: #{_lambda_.12} parent=5 // pred_region
      // Predicated region
      $region17: #{_lambda_.12} parent=15 // pred_check
        %p166 = pneg %p51
      $region18: #{_lambda_.12} parent=15 // pred_check_branch
        %168 = sbr.rel (%p166) target = $region20
      $region19: #{_lambda_.12} parent=15 // pred_region
        %s169 = sld [smem:[#allocation6 + %s23]]
        %p170 = scmp.lt.s32.totalorder %s22, 7
        %s171 = scalar_select %p170, %s22, 7
        %p172 = scmp.lt.s32.totalorder %s169, 0
        %s173 = scalar_select %p172, %s169, 0
        %s174 = sadd.s32 %s173, %s171
        %s175 = smul.addr %s174, 4
        %s176 = scalar_lea.vmem %s3, %s175
        %s177 = sld [smem:[#allocation6 + %s23]]
      $region20: #{_lambda_.12} parent=15 // pred_fallthru
        _
      // Predicated region
      $region21: #{_lambda_.12} parent=15 // pred_check
        %p178 = pneg %p81
      $region22: #{_lambda_.12} parent=15 // pred_check_branch
        %180 = sbr.rel (%p178) target = $region24
      $region23: #{_lambda_.12} parent=15 // pred_region
        %s181 = sld [smem:[#allocation7 + %s23]]
        %p182 = scmp.lt.s32.totalorder %s22, 7
        %s183 = scalar_select %p182, %s22, 7
        %p184 = scmp.lt.s32.totalorder %s181, 0
        %s185 = scalar_select %p184, %s181, 0
        %s186 = sadd.s32 %s185, %s183
        %s187 = smul.addr %s186, 4
        %s188 = scalar_lea.vmem %s4, %s187
        %s189 = sld [smem:[#allocation7 + %s23]]
      $region24: #{_lambda_.12} parent=15 // pred_fallthru
        _
      // Predicated region
      $region25: #{_lambda_.12} parent=15 // pred_check
        %p190 = pneg %p111
      $region26: #{_lambda_.12} parent=15 // pred_check_branch
        %192 = sbr.rel (%p190) target = $region28
      $region27: #{_lambda_.12} parent=15 // pred_region
        %s193 = sld [smem:[#allocation7 + %s23]]
        %p194 = scmp.lt.s32.totalorder %s22, 7
        %s195 = scalar_select %p194, %s22, 7
        %p196 = scmp.lt.s32.totalorder %s193, 0
        %s197 = scalar_select %p196, %s193, 0
        %s198 = sadd.s32 %s197, %s195
        %s199 = smul.addr %s198, 4
        %s200 = scalar_lea.vmem %s5, %s199
        %s201 = sld [smem:[#allocation7 + %s23]]
      $region28: #{_lambda_.12} parent=15 // pred_fallthru
        _
    $region16: #{_lambda_.12} parent=5 // pred_fallthru
      _
    %p202 = scmp.le.s32.totalorder 1, %s15
    %p203 = scmp.lt.s32.totalorder %s15, 9
    %p204 = pnand %p202, %p203
    %p205 = pneg %p204
    // Predicated region
    $region29: #{_lambda_.12} parent=5 // pred_check
      _
    $region30: #{_lambda_.12} parent=5 // pred_check_branch
      %207 = sbr.rel (%p204) target = $region32
    $region31: #{_lambda_.12} parent=5 // pred_region
      %s208 = ssub.s32 %s15, 1
      %s209 = sld [smem:[#allocation6 + %s25]]
      %p210 = scmp.lt.s32.totalorder %s24, 7
      %s211 = scalar_select %p210, %s24, 7
      %p212 = scmp.lt.s32.totalorder %s209, 0
      %s213 = scalar_select %p212, %s209, 0
      %s214 = sadd.s32 %s213, %s211
      %s215 = smul.addr %s214, 4
      %s216 = scalar_lea.vmem %s3, %s215
      %p217 = pneg %p57
      %p218 = pneg %p54
      %s219 = sld [smem:[#allocation7 + %s25]]
      %p220 = scmp.lt.s32.totalorder %s24, 7
      %s221 = scalar_select %p220, %s24, 7
      %p222 = scmp.lt.s32.totalorder %s219, 0
      %s223 = scalar_select %p222, %s219, 0
      %s224 = sadd.s32 %s223, %s221
      %s225 = smul.addr %s224, 4
      %s226 = scalar_lea.vmem %s4, %s225
      %p227 = pneg %p87
      %p228 = pneg %p84
      %s229 = sld [smem:[#allocation7 + %s25]]
      %p230 = scmp.lt.s32.totalorder %s24, 7
      %s231 = scalar_select %p230, %s24, 7
      %p232 = scmp.lt.s32.totalorder %s229, 0
      %s233 = scalar_select %p232, %s229, 0
      %s234 = sadd.s32 %s233, %s231
      %s235 = smul.addr %s234, 4
      %s236 = scalar_lea.vmem %s5, %s235
      %p237 = pneg %p117
      %p238 = pneg %p114
      %p239 = pneg %p147
      %p240 = pneg %p144
      %s241 = sld [smem:[#allocation6 + %s25]]
      %p242 = scmp.lt.s32.totalorder %s24, 7
      %s243 = scalar_select %p242, %s24, 7
      %p244 = scmp.lt.s32.totalorder %s241, 0
      %s245 = scalar_select %p244, %s241, 0
      %s246 = sadd.s32 %s245, %s243
      %s247 = smul.addr %s246, 4
      %s248 = scalar_lea.vmem %s6, %s247
      %s249 = sld [smem:[#allocation6 + %s25]]
      %p250 = scmp.lt.s32.totalorder %s24, 7
      %s251 = scalar_select %p250, %s24, 7
      %p252 = scmp.lt.s32.totalorder %s249, 0
      %s253 = scalar_select %p252, %s249, 0
      %s254 = sadd.s32 %s253, %s251
      %s255 = smul.addr %s254, 4
      %s256 = scalar_lea.vmem %s3, %s255
      %s257 = sld [smem:[#allocation6 + %s25]]
      %s258 = sld [smem:[#allocation7 + %s25]]
      %p259 = scmp.lt.s32.totalorder %s24, 7
      %s260 = scalar_select %p259, %s24, 7
      %p261 = scmp.lt.s32.totalorder %s258, 0
      %s262 = scalar_select %p261, %s258, 0
      %s263 = sadd.s32 %s262, %s260
      %s264 = smul.addr %s263, 4
      %s265 = scalar_lea.vmem %s4, %s264
      %s266 = sld [smem:[#allocation7 + %s25]]
      %s267 = sld [smem:[#allocation7 + %s25]]
      %p268 = scmp.lt.s32.totalorder %s24, 7
      %s269 = scalar_select %p268, %s24, 7
      %p270 = scmp.lt.s32.totalorder %s267, 0
      %s271 = scalar_select %p270, %s267, 0
      %s272 = sadd.s32 %s271, %s269
      %s273 = smul.addr %s272, 4
      %s274 = scalar_lea.vmem %s5, %s273
      %s275 = sld [smem:[#allocation7 + %s25]]
      %s276 = sld [smem:[#allocation6 + %s25]]
      %p277 = scmp.lt.s32.totalorder %s24, 7
      %s278 = scalar_select %p277, %s24, 7
      %p279 = scmp.lt.s32.totalorder %s276, 0
      %s280 = scalar_select %p279, %s276, 0
      %s281 = sadd.s32 %s280, %s278
      %s282 = smul.addr %s281, 4
      %s283 = scalar_lea.vmem %s6, %s282
      %s284 = sld [smem:[#allocation6 + %s25]]
      %s286 = sld [smem:[#allocation6 + %s25]]
      %s287 = sld [smem:[#allocation7 + %s25]]
      %p288 = scmp.eq.s32.totalorder %s287, 0
      // Predicated region
      $region33: #{_lambda_.12} parent=31 // pred_check
        %p289 = pneg %p288
      $region34: #{_lambda_.12} parent=31 // pred_check_branch
        %291 = sbr.rel (%p289) target = $region36
      $region35: #{_lambda_.12} parent=31 // pred_region
        %vm292 = vcmask 7168
        %293 = vst.msk [vmem:[#allocation2] sm:$0xff] %vm292, -inf
        %294 = vst.msk [vmem:[#allocation3] sm:$0xff] %vm292, 0.0
        %vm295 = vcmask 64512
        %296 = vst.msk [vmem:[#allocation4] sm:$0xff] %vm295, 0.0
      $region36: #{_lambda_.12} parent=31 // pred_fallthru
        _
      %v297 = vld [vmem:[%s256] sm:$0xf]
      %v298 = vld [vmem:[%s265] sm:$0xf]
      %v299 = vld [vmem:[%s274] sm:$0xf]
      %vm300 = vcmask 64512
      %v302 = vsel %vm300, %v297, 0
      %v305 = vsel %vm300, %v298, 0
      %307 = vmatpush.bf16.xpose.msra.mxu0 0
      %308 = vmatpush.bf16.xpose.msra.mxu0 0
      %309 = vmatpush.bf16.xpose.msra.mxu0 0
      %310 = vmatpush.bf16.xpose.msra.mxu0 0
      %311 = vmatpush.bf16.xpose.msra.mxu0 0
      %312 = vmatpush.bf16.xpose.msra.mxu0 0
      %313 = vmatpush.bf16.xpose.msra.mxu0 0
      %314 = vmatpush.bf16.xpose.msra.mxu0 %v305
      %315 = vmatmul.bf16.gmra.mxu0 %v302
      %v316 = vpop.f32.mrf.mxu0
      %v317 = vadd.f32 0.0, %v316
      %v318 = vpop.f32.mrf.mxu0
      %319 = vdwg.mxu0
      %v320 = vmul.f32 %v317, 0.35355338
      %s321 = smul.u32 %s287, 8
      %s322 = smul.u32 %s286, 8
      %s323 = sadd.s32 %s321, 8
      %p324 = scmp.gt.s32.totalorder %s323, 8
      %p325 = scmp.eq.s32.totalorder %s287, %s286
      %p326 = por %p324, %p325
      // Predicated region
      $region37: #{_lambda_.12} parent=31 // pred_check
        %p327 = pneg %p326
      $region38: #{_lambda_.12} parent=31 // pred_check_branch
        %329 = sbr.rel (%p327) target = $region40
      $region39: #{_lambda_.12} parent=31 // pred_region
        %v330 = vlaneseq
        %v331 = vand.u32 %v330, 127
        %v332 = vstv %s321
        %v333 = vadd.s32 %v332, %v331
        %vm334 = vcmp.lt.s32.totalorder %v333, 8
        %v335 = vlaneseq
        %v336 = vshrl.u32 %v335, 7
        %v337 = vstv %s322
        %v338 = vadd.s32 %v337, %v336
        %vm339 = vcmp.le.s32.totalorder %v333, %v338
        %vm340 = vmand %vm334, %vm339
        %v341 = vsel %vm340, %v320, -1e+30
        %v342 = vld [vmem:[#allocation2] sm:$0xff]
        %v343 = vsel %vm300, %v341, -inf
        %344 = vmax.xlane.f32.xlu0 %v343
        %v345 = vpop.xlane.xlu0 %344
        %v346 = vmax.f32 %v342, %v345
        %v347 = vsub.f32 %v342, %v346
        %v348 = vmul.f32 %v347, 1.442695
        %v349 = vpow.pop %v348
        %351 = vset.pattern.permute.xlu0 0
        %352 = vperm.xlu0 %351, %v346
        %v353 = vpop.permute.xlu0 %352
        %v355 = vsub.f32 %v341, %v353
        %v356 = vmul.f32 %v355, 1.442695
        %v357 = vpow.pop %v356
        %v358 = vld [vmem:[#allocation3] sm:$0xff]
        %v359 = vmul.f32 %v349, %v358
        %v360 = vsel %vm300, %v357, 0.0
        %361 = vadd.xlane.f32.xlu0 %v360
        %v362 = vpop.xlane.xlu0 %361
        %v363 = vadd.f32 %v359, %v362
        %vm364 = vcmask 7168
        %365 = vst.msk [vmem:[#allocation3] sm:$0xff] %vm364, %v363
        %v366 = vld [vmem:[#allocation4] sm:$0xff]
        %368 = vset.pattern.permute.xlu0 0
        %369 = vperm.xlu0 %368, %v349
        %v370 = vpop.permute.xlu0 %369
        %v372 = vmul.f32 %v370, %v366
        %v373 = vpack.c.bf16 %v357, %v357
        %v375 = vsel %vm300, %v373, 0
        %vm377 = vcmask 1043456
        %v379 = vsel %vm377, %v299, 0
        %381 = vmatpush.bf16.msra.mxu0 0
        %382 = vmatpush.bf16.msra.mxu0 0
        %383 = vmatpush.bf16.msra.mxu0 0
        %384 = vmatpush.bf16.msra.mxu0 0
        %385 = vmatpush.bf16.msra.mxu0 0
        %386 = vmatpush.bf16.msra.mxu0 0
        %387 = vmatpush.bf16.msra.mxu0 0
        %388 = vmatpush.bf16.msra.mxu0 %v379
        %389 = vmatmul.bf16.gmra.mxu0 %v375
        %v390 = vpop.f32.mrf.mxu0
        %v391 = vadd.f32 0.0, %v390
        %v392 = vpop.f32.mrf.mxu0
        %393 = vdwg.mxu0
        %v394 = vadd.f32 %v372, %v391
        %395 = vst.msk [vmem:[#allocation4] sm:$0xff] %vm300, %v394
        %396 = vst.msk [vmem:[#allocation2] sm:$0xff] %vm364, %v346
      $region40: #{_lambda_.12} parent=31 // pred_fallthru
        _
      %p397 = pneg %p326
      // Predicated region
      $region41: #{_lambda_.12} parent=31 // pred_check
        _
      $region42: #{_lambda_.12} parent=31 // pred_check_branch
        %399 = sbr.rel (%p326) target = $region44
      $region43: #{_lambda_.12} parent=31 // pred_region
        %v400 = vld [vmem:[#allocation2] sm:$0xff]
        %v401 = vsel %vm300, %v320, -inf
        %402 = vmax.xlane.f32.xlu0 %v401
        %v403 = vpop.xlane.xlu0 %402
        %v404 = vmax.f32 %v400, %v403
        %v405 = vsub.f32 %v400, %v404
        %v406 = vmul.f32 %v405, 1.442695
        %v407 = vpow.pop %v406
        %409 = vset.pattern.permute.xlu0 0
        %410 = vperm.xlu0 %409, %v404
        %v411 = vpop.permute.xlu0 %410
        %v413 = vsub.f32 %v320, %v411
        %v414 = vmul.f32 %v413, 1.442695
        %v415 = vpow.pop %v414
        %v416 = vld [vmem:[#allocation3] sm:$0xff]
        %v417 = vmul.f32 %v407, %v416
        %v418 = vsel %vm300, %v415, 0.0
        %419 = vadd.xlane.f32.xlu0 %v418
        %v420 = vpop.xlane.xlu0 %419
        %v421 = vadd.f32 %v417, %v420
        %vm422 = vcmask 7168
        %423 = vst.msk [vmem:[#allocation3] sm:$0xff] %vm422, %v421
        %v424 = vld [vmem:[#allocation4] sm:$0xff]
        %426 = vset.pattern.permute.xlu0 0
        %427 = vperm.xlu0 %426, %v407
        %v428 = vpop.permute.xlu0 %427
        %v430 = vmul.f32 %v428, %v424
        %v431 = vpack.c.bf16 %v415, %v415
        %v433 = vsel %vm300, %v431, 0
        %vm435 = vcmask 1043456
        %v437 = vsel %vm435, %v299, 0
        %439 = vmatpush.bf16.msra.mxu0 0
        %440 = vmatpush.bf16.msra.mxu0 0
        %441 = vmatpush.bf16.msra.mxu0 0
        %442 = vmatpush.bf16.msra.mxu0 0
        %443 = vmatpush.bf16.msra.mxu0 0
        %444 = vmatpush.bf16.msra.mxu0 0
        %445 = vmatpush.bf16.msra.mxu0 0
        %446 = vmatpush.bf16.msra.mxu0 %v437
        %447 = vmatmul.bf16.gmra.mxu0 %v433
        %v448 = vpop.f32.mrf.mxu0
        %v449 = vadd.f32 0.0, %v448
        %v450 = vpop.f32.mrf.mxu0
        %451 = vdwg.mxu0
        %v452 = vadd.f32 %v430, %v449
        %453 = vst.msk [vmem:[#allocation4] sm:$0xff] %vm300, %v452
        %454 = vst.msk [vmem:[#allocation2] sm:$0xff] %vm422, %v404
      $region44: #{_lambda_.12} parent=31 // pred_fallthru
        _
      %s455 = sld [smem:[#allocation8 + %s25]]
      %p456 = scmp.eq.s32.totalorder %s455, 1
      // Predicated region
      $region45: #{_lambda_.12} parent=31 // pred_check
        %p457 = pneg %p456
      $region46: #{_lambda_.12} parent=31 // pred_check_branch
        %459 = sbr.rel (%p457) target = $region48
      $region47: #{_lambda_.12} parent=31 // pred_region
        %v460 = vld [vmem:[#allocation3] sm:$0xff]
        %v461 = vrcp.pop %v460
        %v462 = vld [vmem:[#allocation4] sm:$0xff]
        %464 = vset.pattern.permute.xlu0 0
        %465 = vperm.xlu0 %464, %v461
        %v466 = vpop.permute.xlu0 %465
        %v468 = vmul.f32 %v462, %v466
        %v469 = vpack.c.bf16 %v468, %v468
        %vm470 = vcmask 60416
        %471 = vst.msk [vmem:[%s283] sm:$0xf] %vm470, %v469
      $region48: #{_lambda_.12} parent=31 // pred_fallthru
        _
      %s472 = sld [smem:[#allocation6 + %s25]]
      %p473 = scmp.lt.s32.totalorder %s24, 7
      %s474 = scalar_select %p473, %s24, 7
      %p475 = scmp.lt.s32.totalorder %s472, 0
      %s476 = scalar_select %p475, %s472, 0
      %s477 = sadd.s32 %s476, %s474
      %s478 = smul.addr %s477, 4
      %s479 = scalar_lea.vmem %s6, %s478
      // Predicated region
      $region49: #{_lambda_.12} parent=31 // pred_check
        %p480 = pneg %p144
      $region50: #{_lambda_.12} parent=31 // pred_check_branch
        %482 = sbr.rel (%p480) target = $region52
      $region51: #{_lambda_.12} parent=31 // pred_region
        %s483 = sld [smem:[#allocation6 + %s25]]
      $region52: #{_lambda_.12} parent=31 // pred_fallthru
        _
    $region32: #{_lambda_.12} parent=5 // pred_fallthru
      _
    %p484 = scmp.le.s32.totalorder 2, %s15
    // Predicated region
    $region53: #{_lambda_.12} parent=5 // pred_check
      %p485 = pneg %p484
    $region54: #{_lambda_.12} parent=5 // pred_check_branch
      %487 = sbr.rel (%p485) target = $region56
    $region55: #{_lambda_.12} parent=5 // pred_region
      %s488 = ssub.s32 %s15, 2
      // Predicated region
      $region57: #{_lambda_.12} parent=55 // pred_check
        %p489 = pneg %p150
      $region58: #{_lambda_.12} parent=55 // pred_check_branch
        %491 = sbr.rel (%p489) target = $region60
      $region59: #{_lambda_.12} parent=55 // pred_region
        %s492 = sld [smem:[#allocation6 + %s27]]
        %p493 = scmp.lt.s32.totalorder %s26, 7
        %s494 = scalar_select %p493, %s26, 7
        %p495 = scmp.lt.s32.totalorder %s492, 0
        %s496 = scalar_select %p495, %s492, 0
        %s497 = sadd.s32 %s496, %s494
        %s498 = smul.addr %s497, 4
        %s499 = scalar_lea.vmem %s6, %s498
      $region60: #{_lambda_.12} parent=55 // pred_fallthru
        _
    $region56: #{_lambda_.12} parent=5 // pred_fallthru
      _
  $region6: #{_lambda_.12} parent=0 // loop_footer
    %s19 = sadd.s32 1, %s15
  $region7: #{_lambda_.12} parent=0 // loop_footer_branch
    %14 = sbr.rel target = $region3
  $region8: #{_lambda_.12} parent=0 // loop_exit
    _

// kernel: _lambda_.13
$region0: #{_lambda_.13}
  #allocation0 [shape = 'u32[]', space=smem, size = 0x4, offset = 0x4, fixed_abs, tag = 'smem constant byte address 0x4 - core index']
  #allocation1 [shape = 'u32[72,128]{1,0:T(1,128)}', space=vmem, size = 0x9000, scoped, tag = 'internal scratch']
  #allocation2 [shape = 'f32[16,128]{1,0:T(8,128)}', space=vmem, size = 0x2000, scoped, tag = 'scratch operand']
  %s0 = inlined_call_operand.vmem [shape: bf16[16,128], index: 0, kind: input, shape index: {}]
  %s1 = inlined_call_operand.vmem [shape: bf16[128,128], index: 1, kind: input, shape index: {}]
  %s2 = inlined_call_operand.vmem [shape: f32[1,128], index: 2, kind: input, shape index: {}]
  %s3 = inlined_call_operand.vmem [shape: bf16[16,128], index: 3, kind: input, shape index: {}]
  %s4 = inlined_call_operand.vmem [shape: bf16[16,128], index: 4, kind: output, shape index: {}]
  %s5 = sld [smem:[#allocation0]]
  $region34: #{_lambda_.13} parent=0
    _
  %s7 = ssub.s32 1, %s5
  %s8 = scalar_select 0, %s7, %s5
  // Predicated region
  $region2: #{_lambda_.13} parent=0 // pred_check
    _
  $region3: #{_lambda_.13} parent=0 // pred_check_branch
    %10 = sbr.rel (0) target = $region5
  $region4: #{_lambda_.13} parent=0 // pred_region
    _
  $region5: #{_lambda_.13} parent=0 // pred_fallthru
    _
  // Predicated region
  $region6: #{_lambda_.13} parent=0 // pred_check
    _
  $region7: #{_lambda_.13} parent=0 // pred_check_branch
    %12 = sbr.rel (0) target = $region9
  $region8: #{_lambda_.13} parent=0 // pred_region
    _
  $region9: #{_lambda_.13} parent=0 // pred_fallthru
    _
  // Predicated region
  $region10: #{_lambda_.13} parent=0 // pred_check
    _
  $region11: #{_lambda_.13} parent=0 // pred_check_branch
    %14 = sbr.rel (0) target = $region13
  $region12: #{_lambda_.13} parent=0 // pred_region
    _
  $region13: #{_lambda_.13} parent=0 // pred_fallthru
    _
  // Predicated region
  $region14: #{_lambda_.13} parent=0 // pred_check
    _
  $region15: #{_lambda_.13} parent=0 // pred_check_branch
    %16 = sbr.rel (0) target = $region17
  $region16: #{_lambda_.13} parent=0 // pred_region
    _
  $region17: #{_lambda_.13} parent=0 // pred_fallthru
    _
  %p17 = scmp.eq.s32.totalorder 0, 0
  // Predicated region
  $region18: #{_lambda_.13} parent=0 // pred_check
    %p18 = pneg %p17
  $region19: #{_lambda_.13} parent=0 // pred_check_branch
    %20 = sbr.rel (%p18) target = $region21
  $region20: #{_lambda_.13} parent=0 // pred_region
    %21 = vst [vmem:[#allocation2] sm:$0xff] 0.0
    %22 = vst [vmem:[#allocation2 + $0x8] sm:$0xff] 0.0
  $region21: #{_lambda_.13} parent=0 // pred_fallthru
    _
  %v23 = vld [vmem:[#allocation2] sm:$0xff]
  %v24 = vld [vmem:[#allocation2 + $0x8] sm:$0xff]
  %v25 = vld [vmem:[%s0] sm:$0xf]
  %v26 = vld [vmem:[%s0 + $0x4] sm:$0xf]
  %v27 = vld [vmem:[%s1] sm:$0xf]
  %v28 = vld [vmem:[%s1 + $0x4] sm:$0xf]
  %v29 = vld [vmem:[%s1 + $0x8] sm:$0xf]
  %v30 = vld [vmem:[%s1 + $0xc] sm:$0xf]
  %v31 = vld [vmem:[%s1 + $0x10] sm:$0xf]
  %v32 = vld [vmem:[%s1 + $0x14] sm:$0xf]
  %v33 = vld [vmem:[%s1 + $0x18] sm:$0xf]
  %v34 = vld [vmem:[%s1 + $0x1c] sm:$0xf]
  %v35 = vld [vmem:[%s1 + $0x20] sm:$0xf]
  %v36 = vld [vmem:[%s1 + $0x24] sm:$0xf]
  %v37 = vld [vmem:[%s1 + $0x28] sm:$0xf]
  %v38 = vld [vmem:[%s1 + $0x2c] sm:$0xf]
  %v39 = vld [vmem:[%s1 + $0x30] sm:$0xf]
  %v40 = vld [vmem:[%s1 + $0x34] sm:$0xf]
  %v41 = vld [vmem:[%s1 + $0x38] sm:$0xf]
  %v42 = vld [vmem:[%s1 + $0x3c] sm:$0xf]
  %v45 = vunpack.c.l.b16 %v25
  %v46 = vunpack.c.l.b16 %v26
  %v47 = vpack.c.b16 %v46, %v45
  %v65 = vunpack.c.l.b16 %v27
  %v66 = vunpack.c.l.b16 %v28
  %v67 = vunpack.c.l.b16 %v29
  %v68 = vunpack.c.l.b16 %v30
  %v69 = vunpack.c.l.b16 %v31
  %v70 = vunpack.c.l.b16 %v32
  %v71 = vunpack.c.l.b16 %v33
  %v72 = vunpack.c.l.b16 %v34
  %v73 = vunpack.c.l.b16 %v35
  %v74 = vunpack.c.l.b16 %v36
  %v75 = vunpack.c.l.b16 %v37
  %v76 = vunpack.c.l.b16 %v38
  %v77 = vunpack.c.l.b16 %v39
  %v78 = vunpack.c.l.b16 %v40
  %v79 = vunpack.c.l.b16 %v41
  %v80 = vunpack.c.l.b16 %v42
  %v81 = vpack.c.b16 %v66, %v65
  %v82 = vpack.c.b16 %v68, %v67
  %v83 = vpack.c.b16 %v70, %v69
  %v84 = vpack.c.b16 %v72, %v71
  %v85 = vpack.c.b16 %v74, %v73
  %v86 = vpack.c.b16 %v76, %v75
  %v87 = vpack.c.b16 %v78, %v77
  %v88 = vpack.c.b16 %v80, %v79
  %97 = vmatpush.bf16.msra.mxu0 %v88
  %98 = vmatpush.bf16.msra.mxu0 %v87
  %99 = vmatpush.bf16.msra.mxu0 %v86
  %100 = vmatpush.bf16.msra.mxu0 %v85
  %101 = vmatpush.bf16.msra.mxu0 %v84
  %102 = vmatpush.bf16.msra.mxu0 %v83
  %103 = vmatpush.bf16.msra.mxu0 %v82
  %104 = vmatpush.bf16.msra.mxu0 %v81
  %105 = vmatmul.bf16.gmra.mxu0 %v47
  %v106 = vpop.f32.mrf.mxu0
  %v107 = vadd.f32 0.0, %v106
  %v108 = vpop.f32.mrf.mxu0
  %v109 = vadd.f32 0.0, %v108
  %110 = vdwg.mxu0
  %v111 = vadd.f32 %v23, %v107
  %v112 = vadd.f32 %v24, %v109
  %113 = vst [vmem:[#allocation2] sm:$0xff] %v111
  %114 = vst [vmem:[#allocation2 + $0x8] sm:$0xff] %v112
  // Predicated region
  $region22: #{_lambda_.13} parent=0 // pred_check
    %p115 = pneg %p17
  $region23: #{_lambda_.13} parent=0 // pred_check_branch
    %117 = sbr.rel (%p115) target = $region25
  $region24: #{_lambda_.13} parent=0 // pred_region
    %v118 = vld [vmem:[#allocation2] sm:$0xff]
    %v119 = vld [vmem:[#allocation2 + $0x8] sm:$0xff]
    %v120 = vld [vmem:[%s2] sm:$0x1]
    %v122 = vperm.slane %v120, 0
    %v124 = vadd.f32 %v118, %v122
    %v125 = vadd.f32 %v119, %v122
    %v126 = vld [vmem:[%s3] sm:$0xf]
    %v127 = vld [vmem:[%s3 + $0x4] sm:$0xf]
    %v128 = vunpack.c.l.bf16 %v126
    %v129 = vunpack.c.l.bf16 %v127
    %v130 = vadd.f32 %v124, %v128
    %v131 = vadd.f32 %v125, %v129
    %v132 = vpack.c.bf16 %v130, %v130
    %v133 = vpack.c.bf16 %v131, %v131
    %134 = vst [vmem:[%s4] sm:$0xf] %v132
    %135 = vst [vmem:[%s4 + $0x4] sm:$0xf] %v133
  $region25: #{_lambda_.13} parent=0 // pred_fallthru
    _
  // Predicated region
  $region26: #{_lambda_.13} parent=0 // pred_check
    _
  $region27: #{_lambda_.13} parent=0 // pred_check_branch
    %137 = sbr.rel (0) target = $region29
  $region28: #{_lambda_.13} parent=0 // pred_region
    _
  $region29: #{_lambda_.13} parent=0 // pred_fallthru
    _
  // Predicated region
  $region30: #{_lambda_.13} parent=0 // pred_check
    _
  $region31: #{_lambda_.13} parent=0 // pred_check_branch
    %139 = sbr.rel (0) target = $region33
  $region32: #{_lambda_.13} parent=0 // pred_region
    _
  $region33: #{_lambda_.13} parent=0 // pred_fallthru
    _

// kernel: _lambda_.21
$region0: #{_lambda_.21}
  #allocation0 [shape = 'u32[]', space=smem, size = 0x4, offset = 0x4, fixed_abs, tag = 'smem constant byte address 0x4 - core index']
  #allocation1 [shape = 'u32[72,128]{1,0:T(1,128)}', space=vmem, size = 0x9000, scoped, tag = 'internal scratch']
  %s0 = inlined_call_operand.vmem [shape: bf16[16,32], index: 0, kind: input, shape index: {}]
  %s1 = inlined_call_operand.vmem [shape: f32[1,32], index: 1, kind: input, shape index: {}]
  %s2 = inlined_call_operand.vmem [shape: f32[1,32], index: 2, kind: input, shape index: {}]
  %s3 = inlined_call_operand.vmem [shape: bf16[32,128], index: 3, kind: input, shape index: {}]
  %s4 = inlined_call_operand.vmem [shape: f32[1,128], index: 4, kind: input, shape index: {}]
  %s5 = inlined_call_operand.hbm [shape: f32[16,128], index: 5, kind: output, shape index: {}]
  %s6 = sld [smem:[#allocation0]]
  $region30: #{_lambda_.21} parent=0
    _
  %s8 = ssub.s32 1, %s6
  %s9 = scalar_select 0, %s8, %s6
  $region1: #{_lambda_.21} parent=0
    #allocation2 [shape = 'u8[8192]{0}', space=vmem, size = 0x2000, scoped, tag = 'output window, operand 0, single buffered']
    #allocation3 [shape = 's32[1]{0}', space=sflag, size = 0x4, scoped, tag = 'scoped memory for _lambda_.21']
    %10 = vsyncpa [#allocation3], 0
    // Predicated region
    $region2: #{_lambda_.21} parent=1 // pred_check
      _
    $region3: #{_lambda_.21} parent=1 // pred_check_branch
      %12 = sbr.rel (0) target = $region5
    $region4: #{_lambda_.21} parent=1 // pred_region
      _
    $region5: #{_lambda_.21} parent=1 // pred_fallthru
      _
    // Predicated region
    $region6: #{_lambda_.21} parent=1 // pred_check
      _
    $region7: #{_lambda_.21} parent=1 // pred_check_branch
      %14 = sbr.rel (0) target = $region9
    $region8: #{_lambda_.21} parent=1 // pred_region
      _
    $region9: #{_lambda_.21} parent=1 // pred_fallthru
      _
    // Predicated region
    $region10: #{_lambda_.21} parent=1 // pred_check
      _
    $region11: #{_lambda_.21} parent=1 // pred_check_branch
      %16 = sbr.rel (0) target = $region13
    $region12: #{_lambda_.21} parent=1 // pred_region
      _
    $region13: #{_lambda_.21} parent=1 // pred_fallthru
      _
    // Predicated region
    $region14: #{_lambda_.21} parent=1 // pred_check
      _
    $region15: #{_lambda_.21} parent=1 // pred_check_branch
      %18 = sbr.rel (0) target = $region17
    $region16: #{_lambda_.21} parent=1 // pred_region
      _
    $region17: #{_lambda_.21} parent=1 // pred_fallthru
      _
    // Predicated region
    $region18: #{_lambda_.21} parent=1 // pred_check
      _
    $region19: #{_lambda_.21} parent=1 // pred_check_branch
      %20 = sbr.rel (0) target = $region21
    $region20: #{_lambda_.21} parent=1 // pred_region
      _
    $region21: #{_lambda_.21} parent=1 // pred_fallthru
      _
    %v22 = vld [vmem:[%s0] sm:$0xf]
    %v23 = vld [vmem:[%s0 + $0x4] sm:$0xf]
    %v24 = vunpack.c.l.bf16 %v22
    %v25 = vunpack.c.l.bf16 %v23
    %vm26 = vcmask 261120
    %v27 = vsel %vm26, %v24, 0.0
    %28 = vadd.xlane.f32.xlu0 %v27
    %v29 = vpop.xlane.xlu0 %28
    %v30 = vsel %vm26, %v25, 0.0
    %31 = vadd.xlane.f32.xlu0 %v30
    %v32 = vpop.xlane.xlu0 %31
    %v33 = vrcp.pop 32.0
    %v34 = vmul.f32 32.0, %v33
    %v35 = vsub.f32 1.0, %v34
    %v36 = vmul.f32 %v33, %v35
    %v37 = vadd.f32 %v33, %v36
    %vm38 = vweird.f32 %v33
    %v39 = vsel %vm38, %v33, %v37
    %v40 = vmul.f32 %v29, %v39
    %v41 = vmul.f32 %v32, %v39
    %v42 = vsub.f32 %v24, %v40
    %v43 = vsub.f32 %v25, %v41
    %v44 = vmul.f32 %v42, %v42
    %v45 = vmul.f32 %v43, %v43
    %v46 = vsel %vm26, %v44, 0.0
    %47 = vadd.xlane.f32.xlu0 %v46
    %v48 = vpop.xlane.xlu0 %47
    %v49 = vsel %vm26, %v45, 0.0
    %50 = vadd.xlane.f32.xlu0 %v49
    %v51 = vpop.xlane.xlu0 %50
    %v52 = vmul.f32 %v48, %v39
    %v53 = vmul.f32 %v51, %v39
    %v54 = vadd.f32 %v52, 1e-05
    %v55 = vadd.f32 %v53, 1e-05
    %v56 = vrsqrt.pop %v54
    %v57 = vmul.f32 %v56, %v54
    %v58 = vmul.f32 %v57, %v56
    %v59 = vmul.f32 0.5, %v58
    %v60 = vsub.f32 1.5, %v59
    %v61 = vmul.f32 %v56, %v60
    %vm62 = vweird.f32 %v54
    %vm63 = vweird.f32 %v56
    %vm64 = vmor %vm62, %vm63
    %v65 = vsel %vm64, %v56, %v61
    %v66 = vrsqrt.pop %v55
    %v67 = vmul.f32 %v66, %v55
    %v68 = vmul.f32 %v67, %v66
    %v69 = vmul.f32 0.5, %v68
    %v70 = vsub.f32 1.5, %v69
    %v71 = vmul.f32 %v66, %v70
    %vm72 = vweird.f32 %v55
    %vm73 = vweird.f32 %v66
    %vm74 = vmor %vm72, %vm73
    %v75 = vsel %vm74, %v66, %v71
    %v76 = vmul.f32 %v42, %v65
    %v77 = vmul.f32 %v43, %v75
    %v78 = vld [vmem:[%s1] sm:$0x1]
    %v80 = vperm.slane %v78, 0
    %v82 = vmul.f32 %v76, %v80
    %v83 = vmul.f32 %v77, %v80
    %v84 = vld [vmem:[%s2] sm:$0x1]
    %v86 = vperm.slane %v84, 0
    %v88 = vadd.f32 %v82, %v86
    %v89 = vadd.f32 %v83, %v86
    %v90 = vpack.c.bf16 %v89, %v88
    %v91 = vld [vmem:[%s3] sm:$0xf]
    %v92 = vld [vmem:[%s3 + $0x4] sm:$0xf]
    %v93 = vld [vmem:[%s3 + $0x8] sm:$0xf]
    %v94 = vld [vmem:[%s3 + $0xc] sm:$0xf]
    %v95 = vld [vmem:[%s4] sm:$0x1]
    %v97 = vperm.slane %v95, 0
    %v103 = vunpack.c.l.b16 %v91
    %v104 = vunpack.c.l.b16 %v92
    %v105 = vunpack.c.l.b16 %v93
    %v106 = vunpack.c.l.b16 %v94
    %v107 = vpack.c.b16 %v104, %v103
    %v108 = vpack.c.b16 %v106, %v105
    %v112 = vsel %vm26, %v90, 0
    %114 = vmatpush.bf16.msra.mxu0 0
    %115 = vmatpush.bf16.msra.mxu0 0
    %116 = vmatpush.bf16.msra.mxu0 0
    %117 = vmatpush.bf16.msra.mxu0 0
    %118 = vmatpush.bf16.msra.mxu0 0
    %119 = vmatpush.bf16.msra.mxu0 0
    %120 = vmatpush.bf16.msra.mxu0 %v108
    %121 = vmatpush.bf16.msra.mxu0 %v107
    %122 = vmatmul.bf16.gmra.mxu0 %v112
    %v123 = vpop.f32.mrf.mxu0
    %v124 = vadd.f32 %v97, %v123
    %v125 = vpop.f32.mrf.mxu0
    %v126 = vadd.f32 %v97, %v125
    %127 = vdwg.mxu0
    %128 = vst [vmem:[#allocation2] sm:$0xff] %v124
    %129 = vst [vmem:[#allocation2 + $0x8] sm:$0xff] %v126
    // Predicated region
    $region22: #{_lambda_.21} parent=1 // pred_check
      _
    $region23: #{_lambda_.21} parent=1 // pred_check_branch
      %131 = sbr.rel (0) target = $region25
    $region24: #{_lambda_.21} parent=1 // pred_region
      %133 = vsyncadd [#allocation3], 0
      %s134 = sshll.u32 [#allocation2], 4
      %s135 = int_to_ptr.vmem [resolvable:$true] %s134
      %s136 = sshll.u32 %s5, 4
      %s137 = int_to_ptr.hbm [resolvable:$true] %s136
      %142 = dma.vmem_to_hbm [thread:$0]  %s135, 256, %s137, [#allocation3], 128, 128, 8
    $region25: #{_lambda_.21} parent=1 // pred_fallthru
      _
    // Predicated region
    $region26: #{_lambda_.21} parent=1 // pred_check
      _
    $region27: #{_lambda_.21} parent=1 // pred_check_branch
      %144 = sbr.rel (0) target = $region29
    $region28: #{_lambda_.21} parent=1 // pred_region
      %146 = dma.done [#allocation3], 256
    $region29: #{_lambda_.21} parent=1 // pred_fallthru
      _
    %147 = vsyncpa [#allocation3], 1

</llo_original>
